<compile_context>
chip_gen: v7x
topology: tpu7x:2x2x1
jax: 0.10.0
libtpu: 0.0.40
codegen_flags: <defaults>
</compile_context>

<pallas_src>
import functools

import jax
import jax.numpy as jnp
from jax.experimental import pallas as pl
from jax.experimental.pallas import tpu as pltpu

_OUT_PAD = 128  # final layer padded from 1 to 128 output lanes


def _round_up(x, m):
    return ((x + m - 1) // m) * m


# ----------------------------------------------------------------------------
# Hardware probing (best-effort, with conservative fallbacks).
# ----------------------------------------------------------------------------
def _vmem_capacity_bytes():
    try:
        return int(pltpu.get_tpu_info().vmem_capacity_bytes)
    except Exception:
        return 64 << 20  # conservative: assume the small-VMEM generation


def _num_tensorcores():
    try:
        d = jax.devices()[0]
        kind = str(getattr(d, "device_kind", "")).lower()
        if "v7" in kind or "7x" in kind:
            return 2
        return int(getattr(d, "num_cores", 1) or 1)
    except Exception:
        return 1


def choose_config(batch, image_size, h1):
    """Pick (tm, tk, vmem_limit_bytes) for the current TPU generation."""
    vmem = _vmem_capacity_bytes()
    num_tc = _num_tensorcores()

    # Contraction tile: 2048 fits comfortably in 128 MiB VMEM (v5e/v6e);
    # 64 MiB parts (v7x) stay at 1024 so double-buffered w1 tiles fit.
    tk = 2048 if vmem >= (96 << 20) else 1024
    tk = min(tk, _round_up(image_size, 128))  # don't over-pad tiny problems

    # Batch tile: one tile on single-TC chips (w1 streamed once per forward),
    # >= 2 tiles on megacore so the parallel axis shards across cores.
    acc_budget = 16 << 20  # cap for the fp32 (tm, h1) accumulator scratch
    tm_cap = max(8, ((acc_budget // (h1 * 4)) // 8) * 8)
    tiles = 2 if num_tc >= 2 else 1
    tm = _round_up(-(-batch // tiles), 8)
    tm = min(tm, tm_cap)

    vmem_limit = int(min(int(vmem * 0.8), 110 << 20))
    vmem_limit = max(vmem_limit, 32 << 20)
    return tm, tk, vmem_limit


# ----------------------------------------------------------------------------
# Kernel
# ----------------------------------------------------------------------------
def _disc_kernel(x_ref, w1_ref, b1_ref, w2_ref, b2_ref, w3_ref, b3_ref,
                 o_ref, acc_ref):
    k = pl.program_id(1)

    # Layer-1 partial contraction over this K tile (bf16 operands, fp32 acc).
    part = jnp.dot(x_ref[...], w1_ref[...],
                   preferred_element_type=jnp.float32)

    @pl.when(k == 0)
    def _():
        acc_ref[...] = part            # direct assign: no zero-fill + reload

    @pl.when(k > 0)
    def _():
        acc_ref[...] += part

    @pl.when(k == pl.num_programs(1) - 1)
    def _():
        # Finish layer 1: one read + one write of the accumulator.
        h1 = acc_ref[...] + b1_ref[...]
        acc_ref[...] = jnp.where(h1 > 0, h1, 0.2 * h1)

        # Layer 2: Linear + LeakyReLU(0.2).
        h2 = jnp.dot(acc_ref[...].astype(jnp.bfloat16), w2_ref[...],
                     preferred_element_type=jnp.float32) + b2_ref[...]
        h2 = jnp.where(h2 > 0, h2, 0.2 * h2)

        # Layer 3: Linear (output padded to 128 lanes) + Sigmoid.
        h3 = jnp.dot(h2.astype(jnp.bfloat16), w3_ref[...],
                     preferred_element_type=jnp.float32) + b3_ref[...]
        # Numerically stable sigmoid (exp + reciprocal on the EUP slot).
        z = jnp.exp(-jnp.abs(h3))
        r = pl.reciprocal(1.0 + z, approx=True)
        o_ref[...] = jnp.where(h3 >= 0, r, z * r).astype(o_ref.dtype)


# ----------------------------------------------------------------------------
# Parameter preparation (done ONCE, outside the per-call forward)
# ----------------------------------------------------------------------------
def prepare_params(params, *, tk):
    """Pad / cast weights once.  w1's K dim is padded to a multiple of tk;
    the forward pads x to the same Dp, so zero-padding stays exact."""
    w1, b1, w2, b2, w3, b3 = params
    D, H1 = w1.shape
    Dp = _round_up(D, tk)

    w1p = jnp.pad(w1.astype(jnp.float32),
                  ((0, Dp - D), (0, 0))).astype(jnp.bfloat16)
    w2b = w2.astype(jnp.bfloat16)
    w3p = jnp.pad(w3.astype(jnp.float32),
                  ((0, 0), (0, _OUT_PAD - w3.shape[1]))).astype(jnp.bfloat16)
    b1f = b1.astype(jnp.float32).reshape(1, H1)
    b2f = b2.astype(jnp.float32).reshape(1, -1)
    b3p = jnp.pad(b3.astype(jnp.float32).reshape(1, -1),
                  ((0, 0), (0, _OUT_PAD - b3.shape[-1])))
    return (w1p, b1f, w2b, b2f, w3p, b3p)


# ----------------------------------------------------------------------------
# Forward
# ----------------------------------------------------------------------------
@functools.partial(jax.jit,
                   static_argnames=("image_size", "tm", "tk",
                                    "vmem_limit_bytes"))
def discriminator_forward(x, prepared, *, image_size, tm, tk,
                          vmem_limit_bytes=48 * 1024 * 1024):
    """x: any NCHW-like tensor; flattened to (B, image_size) like
    input.view(-1, image_size).  `prepared` comes from prepare_params()."""
    w1p, b1f, w2b, b2f, w3p, b3p = prepared
    Dp, H1 = w1p.shape
    H2 = w2b.shape[1]

    xf = x.reshape(-1, image_size).astype(jnp.float32)   # input.view(-1, D)
    B = xf.shape[0]
    Bp = _round_up(B, tm)

    # Pad x to match the prepared (zero-padded) w1 contraction dim; padded
    # batch rows are sliced off at the end.
    xf = jnp.pad(xf, ((0, Bp - B), (0, Dp - image_size))).astype(jnp.bfloat16)

    grid = (Bp // tm, Dp // tk)
    # Blocks whose index_map is constant are fetched once -> one buffer.
    const = pl.Buffered(1)

    out = pl.pallas_call(
        _disc_kernel,
        out_shape=jax.ShapeDtypeStruct((Bp, _OUT_PAD), jnp.float32),
        grid_spec=pltpu.PrefetchScalarGridSpec(
            num_scalar_prefetch=0,
            grid=grid,
            in_specs=[
                pl.BlockSpec((tm, tk), lambda i, k: (i, k)),        # x tile
                pl.BlockSpec((tk, H1), lambda i, k: (k, 0)),        # w1 tile
                pl.BlockSpec((1, H1), lambda i, k: (0, 0),
                             pipeline_mode=const),                  # b1
                pl.BlockSpec((H1, H2), lambda i, k: (0, 0),
                             pipeline_mode=const),                  # w2
                pl.BlockSpec((1, H2), lambda i, k: (0, 0),
                             pipeline_mode=const),                  # b2
                pl.BlockSpec((H2, _OUT_PAD), lambda i, k: (0, 0),
                             pipeline_mode=const),                  # w3 (padded)
                pl.BlockSpec((1, _OUT_PAD), lambda i, k: (0, 0),
                             pipeline_mode=const),                  # b3 (padded)
            ],
            out_specs=pl.BlockSpec((tm, _OUT_PAD), lambda i, k: (i, 0)),
            scratch_shapes=[pltpu.VMEM((tm, H1), jnp.float32)],
        ),
        compiler_params=pltpu.CompilerParams(
            dimension_semantics=("parallel", "arbitrary"),
            vmem_limit_bytes=vmem_limit_bytes,
        ),
    )(xf, w1p, b1f, w2b, b2f, w3p, b3p)

    return out[:B, :1]


# ----------------------------------------------------------------------------
# Init + references
# ----------------------------------------------------------------------------
def init_params(key, image_size, h1, h2):
    """Same layer shapes as the PyTorch module (scaled dims), stored (in, out).
    Matches torch.nn.Linear's uniform(-1/sqrt(fan_in), 1/sqrt(fan_in)) init."""
    ks = jax.random.split(key, 6)

    def lin(kw, kb, fan_in, fan_out):
        bound = 1.0 / jnp.sqrt(fan_in)
        w = jax.random.uniform(kw, (fan_in, fan_out), jnp.float32, -bound, bound)
        b = jax.random.uniform(kb, (1, fan_out), jnp.float32, -bound, bound)
        return w, b

    w1, b1 = lin(ks[0], ks[1], image_size, h1)
    w2, b2 = lin(ks[2], ks[3], h1, h2)
    w3, b3 = lin(ks[4], ks[5], h2, 1)
    return (w1, b1, w2, b2, w3, b3)


def reference_forward_fp32(x, params):
    w1, b1, w2, b2, w3, b3 = params
    xf = x.reshape(-1, w1.shape[0]).astype(jnp.float32)
    h = xf @ w1 + b1
    h = jnp.where(h > 0, h, 0.2 * h)
    h = h @ w2 + b2
    h = jnp.where(h > 0, h, 0.2 * h)
    h = h @ w3 + b3
    return jax.nn.sigmoid(h)


def reference_forward_bf16(x, params):
    """Mirrors the kernel's dtype strategy: bf16 operands, fp32 accumulation."""
    w1, b1, w2, b2, w3, b3 = params
    xf = x.reshape(-1, w1.shape[0]).astype(jnp.bfloat16)
    h = jnp.dot(xf, w1.astype(jnp.bfloat16),
                preferred_element_type=jnp.float32) + b1
    h = jnp.where(h > 0, h, 0.2 * h)
    h = jnp.dot(h.astype(jnp.bfloat16), w2.astype(jnp.bfloat16),
                preferred_element_type=jnp.float32) + b2
    h = jnp.where(h > 0, h, 0.2 * h)
    h = jnp.dot(h.astype(jnp.bfloat16), w3.astype(jnp.bfloat16),
                preferred_element_type=jnp.float32) + b3
    return jax.nn.sigmoid(h)


if __name__ == "__main__":
    # Real module: image_size = 218*178 = 38804, hidden = 4096, 1024, out = 1.
    # Demo uses the same architecture at small (TPU-tile-friendly) dims.
    IMAGE_SIZE = 2048            # stands in for 38804
    H1, H2 = 512, 256            # stand in for 4096, 1024
    B, C, Hh, Ww = 8, 1, 32, 64  # B*C*Hh*Ww flattens to (B, IMAGE_SIZE)

    key = jax.random.PRNGKey(0)
    kx, kp = jax.random.split(key)
    x = jax.random.normal(kx, (B, C, Hh, Ww), jnp.float32)   # NCHW input
    params = init_params(kp, IMAGE_SIZE, H1, H2)

    # Tiles / VMEM budget picked per TPU generation; weight prep done ONCE.
    tm, tk, vmem_limit = choose_config(B, IMAGE_SIZE, H1)
    prepared = prepare_params(params, tk=tk)

    out = discriminator_forward(x, prepared, image_size=IMAGE_SIZE,
                                tm=tm, tk=tk, vmem_limit_bytes=vmem_limit)
    out = jax.block_until_ready(out)
    assert out.shape == (B, 1), out.shape

    # Tight check against a reference that uses the same bf16/f32 matmul path,
    # loose sanity check against the pure-fp32 PyTorch-equivalent math.
    ref_bf16 = reference_forward_bf16(x, params)
    ref_fp32 = reference_forward_fp32(x, params)
    assert jnp.allclose(out, ref_bf16, atol=2e-3, rtol=2e-3), (
        float(jnp.max(jnp.abs(out - ref_bf16))))
    assert jnp.allclose(out, ref_fp32, atol=5e-2, rtol=5e-2), (
        float(jnp.max(jnp.abs(out - ref_fp32))))

    print("KERNEL_OK")
</pallas_src>

<mosaic_0001>
module attributes {stable_mosaic.version = 11 : i64} {
  func.func @_disc_kernel(%arg0: i32, %arg1: i32, %arg2: memref<8x1024xbf16, #tpu.memory_space<vmem>>, %arg3: memref<1024x512xbf16, #tpu.memory_space<vmem>>, %arg4: memref<1x512xf32, #tpu.memory_space<vmem>>, %arg5: memref<512x256xbf16, #tpu.memory_space<vmem>>, %arg6: memref<1x256xf32, #tpu.memory_space<vmem>>, %arg7: memref<256x128xbf16, #tpu.memory_space<vmem>>, %arg8: memref<1x128xf32, #tpu.memory_space<vmem>>, %arg9: memref<8x128xf32, #tpu.memory_space<vmem>>, %arg10: memref<8x512xf32, #tpu.memory_space<vmem>>) attributes {dimension_semantics = [#tpu.dimension_semantics<parallel>, #tpu.dimension_semantics<arbitrary>], iteration_bounds = array<i64: 1, 2>, scalar_prefetch = 0 : i64, scratch_operands = 1 : i64, tpu.core_type = #tpu.core_type<tc>, window_params = [{transform_indices = @transform_0, window_bounds = array<i64: 8, 1024>}, {transform_indices = @transform_1, window_bounds = array<i64: 1024, 512>}, {pipeline_mode = #tpu.pipeline_mode<synchronous>, transform_indices = @transform_2, window_bounds = array<i64: 1, 512>}, {pipeline_mode = #tpu.pipeline_mode<synchronous>, transform_indices = @transform_3, window_bounds = array<i64: 512, 256>}, {pipeline_mode = #tpu.pipeline_mode<synchronous>, transform_indices = @transform_4, window_bounds = array<i64: 1, 256>}, {pipeline_mode = #tpu.pipeline_mode<synchronous>, transform_indices = @transform_5, window_bounds = array<i64: 256, 128>}, {pipeline_mode = #tpu.pipeline_mode<synchronous>, transform_indices = @transform_6, window_bounds = array<i64: 1, 128>}, {transform_indices = @transform_7, window_bounds = array<i64: 8, 128>}]} {
    %c0 = arith.constant 0 : index
    %c0_0 = arith.constant 0 : index
    %0 = vector.load %arg2[%c0, %c0_0] : memref<8x1024xbf16, #tpu.memory_space<vmem>>, vector<8x1024xbf16>
    %c0_1 = arith.constant 0 : index
    %c0_2 = arith.constant 0 : index
    %1 = vector.load %arg3[%c0_1, %c0_2] : memref<1024x512xbf16, #tpu.memory_space<vmem>>, vector<1024x512xbf16>
    %cst = arith.constant dense<0.000000e+00> : vector<8x512xf32>
    %2 = tpu.matmul %0, %1, %cst {dimension_numbers = #tpu.dot_dimension_numbers<[1], [0], [0], [1], [0, 0, 1, 1], [], []>} : vector<8x1024xbf16>, vector<1024x512xbf16>, vector<8x512xf32> -> vector<8x512xf32>
    %c0_i32 = arith.constant 0 : i32
    %3 = arith.cmpi eq, %arg1, %c0_i32 : i32
    %4 = arith.extui %3 : i1 to i32
    %c0_i32_3 = arith.constant 0 : i32
    %5 = arith.cmpi ne, %4, %c0_i32_3 : i32
    scf.if %5 {
      %c0_7 = arith.constant 0 : index
      %c0_8 = arith.constant 0 : index
      %12 = vector.load %arg10[%c0_7, %c0_8] : memref<8x512xf32, #tpu.memory_space<vmem>>, vector<8x512xf32>
      tpu.vector_store %arg10[%c0_7, %c0_8], %2 {strides = array<i32>} : memref<8x512xf32, #tpu.memory_space<vmem>>, vector<8x512xf32>,
    } else {
    }
    %c0_i32_4 = arith.constant 0 : i32
    %6 = arith.cmpi sgt, %arg1, %c0_i32_4 : i32
    %7 = arith.extui %6 : i1 to i32
    %c0_i32_5 = arith.constant 0 : i32
    %8 = arith.cmpi ne, %7, %c0_i32_5 : i32
    scf.if %8 {
      %c0_7 = arith.constant 0 : index
      %c0_8 = arith.constant 0 : index
      %12 = vector.load %arg10[%c0_7, %c0_8] : memref<8x512xf32, #tpu.memory_space<vmem>>, vector<8x512xf32>
      %13 = arith.addf %12, %2 : vector<8x512xf32>
      %c0_9 = arith.constant 0 : index
      %c0_10 = arith.constant 0 : index
      %14 = vector.load %arg10[%c0_9, %c0_10] : memref<8x512xf32, #tpu.memory_space<vmem>>, vector<8x512xf32>
      tpu.vector_store %arg10[%c0_9, %c0_10], %13 {strides = array<i32>} : memref<8x512xf32, #tpu.memory_space<vmem>>, vector<8x512xf32>,
    } else {
    }
    %c1_i32 = arith.constant 1 : i32
    %9 = arith.cmpi eq, %arg1, %c1_i32 : i32
    %10 = arith.extui %9 : i1 to i32
    %c0_i32_6 = arith.constant 0 : i32
    %11 = arith.cmpi ne, %10, %c0_i32_6 : i32
    scf.if %11 {
      %c0_7 = arith.constant 0 : index
      %c0_8 = arith.constant 0 : index
      %12 = vector.load %arg10[%c0_7, %c0_8] : memref<8x512xf32, #tpu.memory_space<vmem>>, vector<8x512xf32>
      %c0_9 = arith.constant 0 : index
      %c0_10 = arith.constant 0 : index
      %13 = vector.load %arg4[%c0_9, %c0_10] : memref<1x512xf32, #tpu.memory_space<vmem>>, vector<1x512xf32>
      %14 = vector.broadcast %13 : vector<1x512xf32> to vector<8x512xf32>
      %15 = arith.addf %12, %14 : vector<8x512xf32>
      %cst_11 = arith.constant 0.000000e+00 : f32
      %16 = vector.broadcast %cst_11 : f32 to vector<8x512xf32>
      %17 = arith.cmpf ogt, %15, %16 : vector<8x512xf32>
      %cst_12 = arith.constant 2.000000e-01 : f32
      %18 = vector.broadcast %cst_12 : f32 to vector<8x512xf32>
      %19 = arith.mulf %18, %15 : vector<8x512xf32>
      %20 = arith.select %17, %15, %19 : vector<8x512xi1>, vector<8x512xf32>
      %c0_13 = arith.constant 0 : index
      %c0_14 = arith.constant 0 : index
      %21 = vector.load %arg10[%c0_13, %c0_14] : memref<8x512xf32, #tpu.memory_space<vmem>>, vector<8x512xf32>
      tpu.vector_store %arg10[%c0_13, %c0_14], %20 {strides = array<i32>} : memref<8x512xf32, #tpu.memory_space<vmem>>, vector<8x512xf32>,
      %c0_15 = arith.constant 0 : index
      %c0_16 = arith.constant 0 : index
      %22 = vector.load %arg10[%c0_15, %c0_16] : memref<8x512xf32, #tpu.memory_space<vmem>>, vector<8x512xf32>
      %23 = arith.truncf %22 : vector<8x512xf32> to vector<8x512xbf16>
      %c0_17 = arith.constant 0 : index
      %c0_18 = arith.constant 0 : index
      %24 = vector.load %arg5[%c0_17, %c0_18] : memref<512x256xbf16, #tpu.memory_space<vmem>>, vector<512x256xbf16>
      %cst_19 = arith.constant dense<0.000000e+00> : vector<8x256xf32>
      %25 = tpu.matmul %23, %24, %cst_19 {dimension_numbers = #tpu.dot_dimension_numbers<[1], [0], [0], [1], [0, 0, 1, 1], [], []>} : vector<8x512xbf16>, vector<512x256xbf16>, vector<8x256xf32> -> vector<8x256xf32>
      %c0_20 = arith.constant 0 : index
      %c0_21 = arith.constant 0 : index
      %26 = vector.load %arg6[%c0_20, %c0_21] : memref<1x256xf32, #tpu.memory_space<vmem>>, vector<1x256xf32>
      %27 = vector.broadcast %26 : vector<1x256xf32> to vector<8x256xf32>
      %28 = arith.addf %25, %27 : vector<8x256xf32>
      %cst_22 = arith.constant 0.000000e+00 : f32
      %29 = vector.broadcast %cst_22 : f32 to vector<8x256xf32>
      %30 = arith.cmpf ogt, %28, %29 : vector<8x256xf32>
      %cst_23 = arith.constant 2.000000e-01 : f32
      %31 = vector.broadcast %cst_23 : f32 to vector<8x256xf32>
      %32 = arith.mulf %31, %28 : vector<8x256xf32>
      %33 = arith.select %30, %28, %32 : vector<8x256xi1>, vector<8x256xf32>
      %34 = arith.truncf %33 : vector<8x256xf32> to vector<8x256xbf16>
      %c0_24 = arith.constant 0 : index
      %c0_25 = arith.constant 0 : index
      %35 = vector.load %arg7[%c0_24, %c0_25] : memref<256x128xbf16, #tpu.memory_space<vmem>>, vector<256x128xbf16>
      %cst_26 = arith.constant dense<0.000000e+00> : vector<8x128xf32>
      %36 = tpu.matmul %34, %35, %cst_26 {dimension_numbers = #tpu.dot_dimension_numbers<[1], [0], [0], [1], [0, 0, 1, 1], [], []>} : vector<8x256xbf16>, vector<256x128xbf16>, vector<8x128xf32> -> vector<8x128xf32>
      %c0_27 = arith.constant 0 : index
      %c0_28 = arith.constant 0 : index
      %37 = vector.load %arg8[%c0_27, %c0_28] : memref<1x128xf32, #tpu.memory_space<vmem>>, vector<1x128xf32>
      %38 = vector.broadcast %37 : vector<1x128xf32> to vector<8x128xf32>
      %39 = arith.addf %36, %38 : vector<8x128xf32>
      %40 = math.absf %39 : vector<8x128xf32>
      %cst_29 = arith.constant 0.000000e+00 : f32
      %41 = vector.broadcast %cst_29 : f32 to vector<8x128xf32>
      %42 = arith.subf %41, %40 : vector<8x128xf32>
      %43 = math.exp %42 : vector<8x128xf32>
      %cst_30 = arith.constant 1.000000e+00 : f32
      %44 = vector.broadcast %cst_30 : f32 to vector<8x128xf32>
      %45 = arith.addf %44, %43 : vector<8x128xf32>
      %46 = tpu.reciprocal %45 {approx = true} : vector<8x128xf32> -> vector<8x128xf32>
      %cst_31 = arith.constant 0.000000e+00 : f32
      %47 = vector.broadcast %cst_31 : f32 to vector<8x128xf32>
      %48 = arith.cmpf oge, %39, %47 : vector<8x128xf32>
      %49 = arith.mulf %43, %46 : vector<8x128xf32>
      %50 = arith.select %48, %46, %49 : vector<8x128xi1>, vector<8x128xf32>
      %c0_32 = arith.constant 0 : index
      %c0_33 = arith.constant 0 : index
      %51 = vector.load %arg9[%c0_32, %c0_33] : memref<8x128xf32, #tpu.memory_space<vmem>>, vector<8x128xf32>
      tpu.vector_store %arg9[%c0_32, %c0_33], %50 {strides = array<i32>} : memref<8x128xf32, #tpu.memory_space<vmem>>, vector<8x128xf32>,
    } else {
    }
    return
  }
  func.func @transform_0(%arg0: i32, %arg1: i32) -> (i32, i32) {
    %c0_i32 = arith.constant 0 : i32
    return %arg0, %arg1 : i32, i32
  }
  func.func @transform_1(%arg0: i32, %arg1: i32) -> (i32, i32) {
    %c0_i32 = arith.constant 0 : i32
    %c0_i32_0 = arith.constant 0 : i32
    return %arg1, %c0_i32 : i32, i32
  }
  func.func @transform_2(%arg0: i32, %arg1: i32) -> (i32, i32) {
    %c0_i32 = arith.constant 0 : i32
    %c0_i32_0 = arith.constant 0 : i32
    %c0_i32_1 = arith.constant 0 : i32
    return %c0_i32, %c0_i32_0 : i32, i32
  }
  func.func @transform_3(%arg0: i32, %arg1: i32) -> (i32, i32) {
    %c0_i32 = arith.constant 0 : i32
    %c0_i32_0 = arith.constant 0 : i32
    %c0_i32_1 = arith.constant 0 : i32
    return %c0_i32, %c0_i32_0 : i32, i32
  }
  func.func @transform_4(%arg0: i32, %arg1: i32) -> (i32, i32) {
    %c0_i32 = arith.constant 0 : i32
    %c0_i32_0 = arith.constant 0 : i32
    %c0_i32_1 = arith.constant 0 : i32
    return %c0_i32, %c0_i32_0 : i32, i32
  }
  func.func @transform_5(%arg0: i32, %arg1: i32) -> (i32, i32) {
    %c0_i32 = arith.constant 0 : i32
    %c0_i32_0 = arith.constant 0 : i32
    %c0_i32_1 = arith.constant 0 : i32
    return %c0_i32, %c0_i32_0 : i32, i32
  }
  func.func @transform_6(%arg0: i32, %arg1: i32) -> (i32, i32) {
    %c0_i32 = arith.constant 0 : i32
    %c0_i32_0 = arith.constant 0 : i32
    %c0_i32_1 = arith.constant 0 : i32
    return %c0_i32, %c0_i32_0 : i32, i32
  }
  func.func @transform_7(%arg0: i32, %arg1: i32) -> (i32, i32) {
    %c0_i32 = arith.constant 0 : i32
    %c0_i32_0 = arith.constant 0 : i32
    return %arg0, %c0_i32 : i32, i32
  }
}

</mosaic_0001>

<llo_original>
// kernel: discriminator_forward.1
$region0: #{discriminator_forward.1}
  #allocation0 [shape = 'u32[]', space=smem, size = 0x4, offset = 0x4, fixed_abs, tag = 'smem constant byte address 0x4 - core index']
  #allocation1 [shape = 'u32[144,128]{1,0:T(1,128)}', space=vmem, size = 0x12000, scoped, tag = 'internal scratch']
  #allocation2 [shape = 'f32[8,512]{1,0:T(8,128)}', space=vmem, size = 0x4000, scoped, tag = 'scratch operand']
  %s0 = inlined_call_operand.vmem [shape: bf16[8,2048], index: 0, kind: input, shape index: {}]
  %s1 = inlined_call_operand.hbm [shape: bf16[2048,512], index: 1, kind: input, shape index: {}]
  %s2 = inlined_call_operand.hbm [shape: f32[1,512], index: 2, kind: input, shape index: {}]
  %s3 = inlined_call_operand.hbm [shape: bf16[512,256], index: 3, kind: input, shape index: {}]
  %s4 = inlined_call_operand.hbm [shape: f32[1,256], index: 4, kind: input, shape index: {}]
  %s5 = inlined_call_operand.hbm [shape: bf16[256,128], index: 5, kind: input, shape index: {}]
  %s6 = inlined_call_operand.hbm [shape: f32[1,128], index: 6, kind: input, shape index: {}]
  %s7 = inlined_call_operand.vmem [shape: f32[8,128], index: 7, kind: output, shape index: {}]
  %s8 = sld [smem:[#allocation0]]
  $region97: #{discriminator_forward.1} parent=0
    _
  %s10 = ssub.s32 1, %s8
  %s11 = scalar_select 0, %s10, %s8
  $region1: #{discriminator_forward.1} parent=0
    #allocation3 [shape = 'u8[2097152]{0}', space=vmem, size = 0x200000, scoped, tag = 'input window, operand 1']
    #allocation4 [shape = 's32[2]{0}', space=sflag, size = 0x8, scoped, tag = 'scoped memory for discriminator_forward.1']
    #allocation5 [shape = 'u8[2048]{0}', space=vmem, size = 0x800, scoped, tag = 'input window, operand 2, single buffered']
    #allocation6 [shape = 's32[1]{0}', space=sflag, size = 0x4, scoped, tag = 'scoped memory for discriminator_forward.1']
    #allocation7 [shape = 'u8[262144]{0}', space=vmem, size = 0x40000, scoped, tag = 'input window, operand 3, single buffered']
    #allocation8 [shape = 'u8[1024]{0}', space=vmem, size = 0x400, scoped, tag = 'input window, operand 4, single buffered']
    #allocation9 [shape = 's32[1]{0}', space=sflag, size = 0x4, scoped, tag = 'scoped memory for discriminator_forward.1']
    #allocation10 [shape = 'u8[65536]{0}', space=vmem, size = 0x10000, scoped, tag = 'input window, operand 5, single buffered']
    #allocation11 [shape = 'u8[512]{0}', space=vmem, size = 0x400, scoped, tag = 'input window, operand 6, single buffered']
    #allocation12 [shape = 's32[1]{0}', space=sflag, size = 0x4, scoped, tag = 'scoped memory for discriminator_forward.1']
    %12 = vsyncpa [#allocation4], 0
    %s13 = scalar_lea.sflag [#allocation4], 1
    %14 = vsyncpa %s13, 0
    %15 = vsyncpa [#allocation6], 0
    %16 = vsyncpa [#allocation9], 0
    %17 = vsyncpa [#allocation12], 0
    loop: start=0, step=1, limit=4
    $region2: #{discriminator_forward.1} parent=1 // loop_pre_header
      _
    $region3: #{discriminator_forward.1} parent=1 // loop_header
      %s19 = sphi 0, %s23
      %p20 = scmp.ge.s32.totalorder %s19, 4
      %s26 = sphi 0, %s38
      %s27 = sphi 0, %s34
      %s28 = sphi 0, %s26
      %s29 = sphi 0, %s27
      %s30 = sphi 0, %s28
      %s31 = sphi 0, %s29
      %s43 = sphi 0, %s45
      %s46 = sphi 0, %s43
      %s47 = sphi 0, %s46
      %s63 = sphi 0, %s47
      %s69 = sphi 0, %s71
      %s72 = sphi 0, %s69
      %s73 = sphi 0, %s72
      %s89 = sphi 0, %s73
      %s93 = sphi 0, %s93
      %s95 = sphi 0, %s93
      %s96 = sphi 0, %s95
      %s110 = sphi 0, %s96
      %s114 = sphi 0, %s114
      %s116 = sphi 0, %s114
      %s117 = sphi 0, %s116
      %s131 = sphi 0, %s117
      %s135 = sphi 0, %s135
      %s137 = sphi 0, %s135
      %s138 = sphi 0, %s137
      %s152 = sphi 0, %s138
      %s156 = sphi 0, %s156
      %s158 = sphi 0, %s156
      %s159 = sphi 0, %s158
      %s173 = sphi 0, %s159
      %s177 = sphi 0, %s177
      %s179 = sphi 0, %s177
      %s180 = sphi 0, %s179
      %s194 = sphi 0, %s180
      %s200 = sphi 0, %s202
      %s203 = sphi 0, %s200
      %s204 = sphi 0, %s203
      %s220 = sphi 0, %s204
    $region4: #{discriminator_forward.1} parent=1 // loop_header_branch
      %22 = sbr.rel (%p20) target = $region8
    $region5: #{discriminator_forward.1} parent=1 // loop_body
      %s24 = ssub.s32 %s19, 1
      %s25 = ssub.s32 %s19, 2
      %s32 = sadd.s32 1, %s27
      %p33 = scmp.ge.s32.totalorder %s32, 2
      %s34 = scalar_select %p33, 0, %s32
      %s35 = sadd.s32 1, %s26
      %s36 = scalar_select %p33, %s35, %s26
      %p37 = scmp.ge.s32.totalorder %s36, 1
      %s38 = scalar_select %p37, 0, %s36
      %s39 = ssub.s32 %s26, %s38
      %s40 = ssub.s32 %s27, %s34
      %s41 = sor.u32 %s39, %s40
      %p42 = scmp.eq.s32.totalorder %s41, 0
      %s44 = sadd.s32 %s43, 1
      %s45 = scalar_select %p42, %s43, %s44
      %p48 = pneg %p42
      %p49 = scmp.eq.s32.totalorder %s19, 1
      %p50 = por %p48, %p49
      %p51 = scmp.ne.s32.totalorder %s43, %s46
      %p52 = scmp.eq.s32.totalorder %s19, 0
      %p53 = por %p51, %p52
      %p54 = scmp.ne.s32.totalorder %s43, %s46
      %p55 = scmp.eq.s32.totalorder %s24, 1
      %p56 = por %p54, %p55
      %p57 = scmp.ne.s32.totalorder %s46, %s47
      %p58 = scmp.eq.s32.totalorder %s24, 0
      %p59 = por %p57, %p58
      %p60 = scmp.ne.s32.totalorder %s46, %s47
      %p61 = scmp.eq.s32.totalorder %s25, 1
      %p62 = por %p60, %p61
      %p64 = scmp.ne.s32.totalorder %s47, %s63
      %p65 = scmp.eq.s32.totalorder %s25, 0
      %p66 = por %p64, %p65
      %s67 = ssub.s32 %s27, %s34
      %p68 = scmp.eq.s32.totalorder %s67, 0
      %s70 = sadd.s32 %s69, 1
      %s71 = scalar_select %p68, %s69, %s70
      %p74 = pneg %p68
      %p75 = scmp.eq.s32.totalorder %s19, 1
      %p76 = por %p74, %p75
      %p77 = scmp.ne.s32.totalorder %s69, %s72
      %p78 = scmp.eq.s32.totalorder %s19, 0
      %p79 = por %p77, %p78
      %p80 = scmp.ne.s32.totalorder %s69, %s72
      %p81 = scmp.eq.s32.totalorder %s24, 1
      %p82 = por %p80, %p81
      %p83 = scmp.ne.s32.totalorder %s72, %s73
      %p84 = scmp.eq.s32.totalorder %s24, 0
      %p85 = por %p83, %p84
      %p86 = scmp.ne.s32.totalorder %s72, %s73
      %p87 = scmp.eq.s32.totalorder %s25, 1
      %p88 = por %p86, %p87
      %p90 = scmp.ne.s32.totalorder %s73, %s89
      %p91 = scmp.eq.s32.totalorder %s25, 0
      %p92 = por %p90, %p91
      %s94 = sadd.s32 %s93, 1
      %p97 = scmp.eq.s32.totalorder %s19, 1
      %p98 = scmp.ne.s32.totalorder %s93, %s95
      %p99 = scmp.eq.s32.totalorder %s19, 0
      %p100 = por %p98, %p99
      %p101 = scmp.ne.s32.totalorder %s93, %s95
      %p102 = scmp.eq.s32.totalorder %s24, 1
      %p103 = por %p101, %p102
      %p104 = scmp.ne.s32.totalorder %s95, %s96
      %p105 = scmp.eq.s32.totalorder %s24, 0
      %p106 = por %p104, %p105
      %p107 = scmp.ne.s32.totalorder %s95, %s96
      %p108 = scmp.eq.s32.totalorder %s25, 1
      %p109 = por %p107, %p108
      %p111 = scmp.ne.s32.totalorder %s96, %s110
      %p112 = scmp.eq.s32.totalorder %s25, 0
      %p113 = por %p111, %p112
      %s115 = sadd.s32 %s114, 1
      %p118 = scmp.eq.s32.totalorder %s19, 1
      %p119 = scmp.ne.s32.totalorder %s114, %s116
      %p120 = scmp.eq.s32.totalorder %s19, 0
      %p121 = por %p119, %p120
      %p122 = scmp.ne.s32.totalorder %s114, %s116
      %p123 = scmp.eq.s32.totalorder %s24, 1
      %p124 = por %p122, %p123
      %p125 = scmp.ne.s32.totalorder %s116, %s117
      %p126 = scmp.eq.s32.totalorder %s24, 0
      %p127 = por %p125, %p126
      %p128 = scmp.ne.s32.totalorder %s116, %s117
      %p129 = scmp.eq.s32.totalorder %s25, 1
      %p130 = por %p128, %p129
      %p132 = scmp.ne.s32.totalorder %s117, %s131
      %p133 = scmp.eq.s32.totalorder %s25, 0
      %p134 = por %p132, %p133
      %s136 = sadd.s32 %s135, 1
      %p139 = scmp.eq.s32.totalorder %s19, 1
      %p140 = scmp.ne.s32.totalorder %s135, %s137
      %p141 = scmp.eq.s32.totalorder %s19, 0
      %p142 = por %p140, %p141
      %p143 = scmp.ne.s32.totalorder %s135, %s137
      %p144 = scmp.eq.s32.totalorder %s24, 1
      %p145 = por %p143, %p144
      %p146 = scmp.ne.s32.totalorder %s137, %s138
      %p147 = scmp.eq.s32.totalorder %s24, 0
      %p148 = por %p146, %p147
      %p149 = scmp.ne.s32.totalorder %s137, %s138
      %p150 = scmp.eq.s32.totalorder %s25, 1
      %p151 = por %p149, %p150
      %p153 = scmp.ne.s32.totalorder %s138, %s152
      %p154 = scmp.eq.s32.totalorder %s25, 0
      %p155 = por %p153, %p154
      %s157 = sadd.s32 %s156, 1
      %p160 = scmp.eq.s32.totalorder %s19, 1
      %p161 = scmp.ne.s32.totalorder %s156, %s158
      %p162 = scmp.eq.s32.totalorder %s19, 0
      %p163 = por %p161, %p162
      %p164 = scmp.ne.s32.totalorder %s156, %s158
      %p165 = scmp.eq.s32.totalorder %s24, 1
      %p166 = por %p164, %p165
      %p167 = scmp.ne.s32.totalorder %s158, %s159
      %p168 = scmp.eq.s32.totalorder %s24, 0
      %p169 = por %p167, %p168
      %p170 = scmp.ne.s32.totalorder %s158, %s159
      %p171 = scmp.eq.s32.totalorder %s25, 1
      %p172 = por %p170, %p171
      %p174 = scmp.ne.s32.totalorder %s159, %s173
      %p175 = scmp.eq.s32.totalorder %s25, 0
      %p176 = por %p174, %p175
      %s178 = sadd.s32 %s177, 1
      %p181 = scmp.eq.s32.totalorder %s19, 1
      %p182 = scmp.ne.s32.totalorder %s177, %s179
      %p183 = scmp.eq.s32.totalorder %s19, 0
      %p184 = por %p182, %p183
      %p185 = scmp.ne.s32.totalorder %s177, %s179
      %p186 = scmp.eq.s32.totalorder %s24, 1
      %p187 = por %p185, %p186
      %p188 = scmp.ne.s32.totalorder %s179, %s180
      %p189 = scmp.eq.s32.totalorder %s24, 0
      %p190 = por %p188, %p189
      %p191 = scmp.ne.s32.totalorder %s179, %s180
      %p192 = scmp.eq.s32.totalorder %s25, 1
      %p193 = por %p191, %p192
      %p195 = scmp.ne.s32.totalorder %s180, %s194
      %p196 = scmp.eq.s32.totalorder %s25, 0
      %p197 = por %p195, %p196
      %s198 = ssub.s32 %s26, %s38
      %p199 = scmp.eq.s32.totalorder %s198, 0
      %s201 = sadd.s32 %s200, 1
      %s202 = scalar_select %p199, %s200, %s201
      %p205 = pneg %p199
      %p206 = scmp.eq.s32.totalorder %s19, 1
      %p207 = por %p205, %p206
      %p208 = scmp.ne.s32.totalorder %s200, %s203
      %p209 = scmp.eq.s32.totalorder %s19, 0
      %p210 = por %p208, %p209
      %p211 = scmp.ne.s32.totalorder %s200, %s203
      %p212 = scmp.eq.s32.totalorder %s24, 1
      %p213 = por %p211, %p212
      %p214 = scmp.ne.s32.totalorder %s203, %s204
      %p215 = scmp.eq.s32.totalorder %s24, 0
      %p216 = por %p214, %p215
      %p217 = scmp.ne.s32.totalorder %s203, %s204
      %p218 = scmp.eq.s32.totalorder %s25, 1
      %p219 = por %p217, %p218
      %p221 = scmp.ne.s32.totalorder %s204, %s220
      %p222 = scmp.eq.s32.totalorder %s25, 0
      %p223 = por %p221, %p222
      %p224 = scmp.le.s32.totalorder 1, %s19
      %p225 = scmp.lt.s32.totalorder %s19, 3
      %p226 = pnand %p224, %p225
      %p227 = pneg %p226
      // Predicated region
      $region9: #{discriminator_forward.1} parent=5 // pred_check
        _
      $region10: #{discriminator_forward.1} parent=5 // pred_check_branch
        %229 = sbr.rel (%p226) target = $region12
      $region11: #{discriminator_forward.1} parent=5 // pred_region
        %s230 = ssub.s32 %s19, 1
        // Predicated region
        $region13: #{discriminator_forward.1} parent=11 // pred_check
          %p231 = pneg %p106
        $region14: #{discriminator_forward.1} parent=11 // pred_check_branch
          %233 = sbr.rel (%p231) target = $region16
        $region15: #{discriminator_forward.1} parent=11 // pred_region
          %s235 = ssub.s32 64, 64
          %236 = vsyncadd [#allocation6], %s235
          %s238 = sshll.u32 [#allocation5], 4
          %s239 = int_to_ptr.vmem [resolvable:$true] %s238
          %241 = dma.hbm_to_vmem [thread:$0]  %s2, 64, %s239, [#allocation6]
        $region16: #{discriminator_forward.1} parent=11 // pred_fallthru
          _
        // Predicated region
        $region17: #{discriminator_forward.1} parent=11 // pred_check
          %p242 = pneg %p127
        $region18: #{discriminator_forward.1} parent=11 // pred_check_branch
          %244 = sbr.rel (%p242) target = $region20
        $region19: #{discriminator_forward.1} parent=11 // pred_region
          %s246 = ssub.s32 8192, 8192
          %247 = vsyncadd [#allocation6], %s246
          %s248 = sshll.u32 [#allocation7], 4
          %s249 = int_to_ptr.vmem [resolvable:$true] %s248
          %254 = dma.hbm_to_vmem [thread:$0]  %s3, 8192, %s249, [#allocation6], 128, 128, 8
        $region20: #{discriminator_forward.1} parent=11 // pred_fallthru
          _
        // Predicated region
        $region21: #{discriminator_forward.1} parent=11 // pred_check
          %p255 = pneg %p148
        $region22: #{discriminator_forward.1} parent=11 // pred_check_branch
          %257 = sbr.rel (%p255) target = $region24
        $region23: #{discriminator_forward.1} parent=11 // pred_region
          %s259 = ssub.s32 32, 32
          %260 = vsyncadd [#allocation9], %s259
          %s262 = sshll.u32 [#allocation8], 4
          %s263 = int_to_ptr.vmem [resolvable:$true] %s262
          %265 = dma.hbm_to_vmem [thread:$0]  %s4, 32, %s263, [#allocation9]
        $region24: #{discriminator_forward.1} parent=11 // pred_fallthru
          _
        // Predicated region
        $region25: #{discriminator_forward.1} parent=11 // pred_check
          %p266 = pneg %p169
        $region26: #{discriminator_forward.1} parent=11 // pred_check_branch
          %268 = sbr.rel (%p266) target = $region28
        $region27: #{discriminator_forward.1} parent=11 // pred_region
          %s270 = ssub.s32 2048, 2048
          %271 = vsyncadd [#allocation9], %s270
          %s272 = sshll.u32 [#allocation10], 4
          %s273 = int_to_ptr.vmem [resolvable:$true] %s272
          %278 = dma.hbm_to_vmem [thread:$0]  %s5, 2048, %s273, [#allocation9], 64, 64, 4
        $region28: #{discriminator_forward.1} parent=11 // pred_fallthru
          _
        // Predicated region
        $region29: #{discriminator_forward.1} parent=11 // pred_check
          %p279 = pneg %p190
        $region30: #{discriminator_forward.1} parent=11 // pred_check_branch
          %281 = sbr.rel (%p279) target = $region32
        $region31: #{discriminator_forward.1} parent=11 // pred_region
          %s283 = ssub.s32 16, 16
          %284 = vsyncadd [#allocation12], %s283
          %s286 = sshll.u32 [#allocation11], 4
          %s287 = int_to_ptr.vmem [resolvable:$true] %s286
          %289 = dma.hbm_to_vmem [thread:$0]  %s6, 16, %s287, [#allocation12]
        $region32: #{discriminator_forward.1} parent=11 // pred_fallthru
          _
      $region12: #{discriminator_forward.1} parent=5 // pred_fallthru
        _
      %p290 = scmp.lt.s32.totalorder %s19, 2
      // Predicated region
      $region33: #{discriminator_forward.1} parent=5 // pred_check
        %p291 = pneg %p290
      $region34: #{discriminator_forward.1} parent=5 // pred_check_branch
        %293 = sbr.rel (%p291) target = $region36
      $region35: #{discriminator_forward.1} parent=5 // pred_region
        // Predicated region
        $region37: #{discriminator_forward.1} parent=35 // pred_check
          %p294 = pneg %p53
        $region38: #{discriminator_forward.1} parent=35 // pred_check_branch
          %296 = sbr.rel (%p294) target = $region40
        $region39: #{discriminator_forward.1} parent=35 // pred_region
          %s297 = smul.u32 8, %s27
          %p298 = scmp.lt.s32.totalorder %s26, 0
          %s299 = scalar_select %p298, %s26, 0
          %p300 = scmp.lt.s32.totalorder %s297, 15
          %s301 = scalar_select %p300, %s297, 15
          %s302 = smul.addr %s299, 16
          %s303 = sadd.s32 %s301, %s302
          %s304 = smul.addr %s303, 4
          %s305 = scalar_lea.vmem %s0, %s304
          %s306 = smul.u32 8, %s27
        $region40: #{discriminator_forward.1} parent=35 // pred_fallthru
          _
        // Predicated region
        $region41: #{discriminator_forward.1} parent=35 // pred_check
          %p307 = pneg %p79
        $region42: #{discriminator_forward.1} parent=35 // pred_check_branch
          %309 = sbr.rel (%p307) target = $region44
        $region43: #{discriminator_forward.1} parent=35 // pred_region
          %s310 = sand.u32 %s69, 1
          %s311 = scalar_lea.sflag [#allocation4], %s310
          %s312 = sand.u32 %s69, 1
          %s313 = smul.addr %s312, 2048
          %s314 = scalar_lea.vmem [#allocation3], %s313
          %s315 = smul.u32 128, %s27
          %s317 = ssub.s32 32768, 32768
          %318 = vsyncadd %s311, %s317
          %s319 = smul.addr %s315, 4
          %s320 = smul.addr %s319, 64
          %s321 = scalar_lea.hbm %s1, %s320
          %s322 = sshll.u32 %s314, 4
          %s323 = int_to_ptr.vmem [resolvable:$true] %s322
          %328 = dma.hbm_to_vmem [thread:$0]  %s321, 32768, %s323, %s311, 256, 256, 16
        $region44: #{discriminator_forward.1} parent=35 // pred_fallthru
          _
      $region36: #{discriminator_forward.1} parent=5 // pred_fallthru
        _
      %p329 = scmp.le.s32.totalorder 1, %s19
      %p330 = scmp.lt.s32.totalorder %s19, 3
      %p331 = pnand %p329, %p330
      %p332 = pneg %p331
      // Predicated region
      $region45: #{discriminator_forward.1} parent=5 // pred_check
        _
      $region46: #{discriminator_forward.1} parent=5 // pred_check_branch
        %334 = sbr.rel (%p331) target = $region48
      $region47: #{discriminator_forward.1} parent=5 // pred_region
        %s335 = ssub.s32 %s19, 1
        %s336 = sand.u32 %s72, 1
        %s337 = scalar_lea.sflag [#allocation4], %s336
        %s338 = sand.u32 %s72, 1
        %s339 = smul.addr %s338, 2048
        %s340 = scalar_lea.vmem [#allocation3], %s339
        // Predicated region
        $region49: #{discriminator_forward.1} parent=47 // pred_check
          %p341 = pneg %p85
        $region50: #{discriminator_forward.1} parent=47 // pred_check_branch
          %343 = sbr.rel (%p341) target = $region52
        $region51: #{discriminator_forward.1} parent=47 // pred_region
          %344 = dma.done %s337, 32768
        $region52: #{discriminator_forward.1} parent=47 // pred_fallthru
          _
        // Predicated region
        $region53: #{discriminator_forward.1} parent=47 // pred_check
          %p345 = pneg %p106
        $region54: #{discriminator_forward.1} parent=47 // pred_check_branch
          %347 = sbr.rel (%p345) target = $region56
        $region55: #{discriminator_forward.1} parent=47 // pred_region
          %348 = dma.done [#allocation6], 64
        $region56: #{discriminator_forward.1} parent=47 // pred_fallthru
          _
        // Predicated region
        $region57: #{discriminator_forward.1} parent=47 // pred_check
          %p349 = pneg %p127
        $region58: #{discriminator_forward.1} parent=47 // pred_check_branch
          %351 = sbr.rel (%p349) target = $region60
        $region59: #{discriminator_forward.1} parent=47 // pred_region
          %352 = dma.done [#allocation6], 8192
        $region60: #{discriminator_forward.1} parent=47 // pred_fallthru
          _
        // Predicated region
        $region61: #{discriminator_forward.1} parent=47 // pred_check
          %p353 = pneg %p148
        $region62: #{discriminator_forward.1} parent=47 // pred_check_branch
          %355 = sbr.rel (%p353) target = $region64
        $region63: #{discriminator_forward.1} parent=47 // pred_region
          %356 = dma.done [#allocation9], 32
        $region64: #{discriminator_forward.1} parent=47 // pred_fallthru
          _
        // Predicated region
        $region65: #{discriminator_forward.1} parent=47 // pred_check
          %p357 = pneg %p169
        $region66: #{discriminator_forward.1} parent=47 // pred_check_branch
          %359 = sbr.rel (%p357) target = $region68
        $region67: #{discriminator_forward.1} parent=47 // pred_region
          %360 = dma.done [#allocation9], 2048
        $region68: #{discriminator_forward.1} parent=47 // pred_fallthru
          _
        // Predicated region
        $region69: #{discriminator_forward.1} parent=47 // pred_check
          %p361 = pneg %p190
        $region70: #{discriminator_forward.1} parent=47 // pred_check_branch
          %363 = sbr.rel (%p361) target = $region72
        $region71: #{discriminator_forward.1} parent=47 // pred_region
          %364 = dma.done [#allocation12], 16
        $region72: #{discriminator_forward.1} parent=47 // pred_fallthru
          _
        %s365 = smul.u32 8, %s29
        %p366 = scmp.lt.s32.totalorder %s28, 0
        %s367 = scalar_select %p366, %s28, 0
        %p368 = scmp.lt.s32.totalorder %s365, 15
        %s369 = scalar_select %p368, %s365, 15
        %s370 = smul.addr %s367, 16
        %s371 = sadd.s32 %s369, %s370
        %s372 = smul.addr %s371, 4
        %s373 = scalar_lea.vmem %s0, %s372
        %p374 = pneg %p59
        %p375 = pneg %p56
        %s376 = sand.u32 %s72, 1
        %s377 = scalar_lea.sflag [#allocation4], %s376
        %s378 = sand.u32 %s72, 1
        %s379 = smul.addr %s378, 2048
        %s380 = scalar_lea.vmem [#allocation3], %s379
        %p381 = pneg %p85
        %p382 = pneg %p82
        %p383 = pneg %p106
        %p384 = pneg %p103
        %p385 = pneg %p127
        %p386 = pneg %p124
        %p387 = pneg %p148
        %p388 = pneg %p145
        %p389 = pneg %p169
        %p390 = pneg %p166
        %p391 = pneg %p190
        %p392 = pneg %p187
        %p393 = pneg %p216
        %p394 = pneg %p213
        %p395 = scmp.lt.s32.totalorder %s28, 0
        %s396 = scalar_select %p395, %s28, 0
        %s397 = smul.addr %s396, 8
        %s398 = scalar_lea.vmem %s7, %s397
        %s399 = smul.u32 8, %s29
        %p400 = scmp.lt.s32.totalorder %s28, 0
        %s401 = scalar_select %p400, %s28, 0
        %p402 = scmp.lt.s32.totalorder %s399, 15
        %s403 = scalar_select %p402, %s399, 15
        %s404 = smul.addr %s401, 16
        %s405 = sadd.s32 %s403, %s404
        %s406 = smul.addr %s405, 4
        %s407 = scalar_lea.vmem %s0, %s406
        %s408 = smul.u32 8, %s29
        %s409 = smul.u32 128, %s29
        %p410 = scmp.lt.s32.totalorder %s28, 0
        %s411 = scalar_select %p410, %s28, 0
        %s412 = smul.addr %s411, 8
        %s413 = scalar_lea.vmem %s7, %s412
        %v415 = vld [vmem:[%s407] sm:$0xff]
        %v416 = vld [vmem:[%s407 + $0x8] sm:$0xff]
        %v417 = vld [vmem:[%s407 + $0x10] sm:$0xff]
        %v418 = vld [vmem:[%s407 + $0x18] sm:$0xff]
        %v419 = vld [vmem:[%s340] sm:$0xff]
        %v420 = vld [vmem:[%s340 + $0x8] sm:$0xff]
        %v421 = vld [vmem:[%s340 + $0x10] sm:$0xff]
        %v422 = vld [vmem:[%s340 + $0x18] sm:$0xff]
        %v423 = vld [vmem:[%s340 + $0x20] sm:$0xff]
        %v424 = vld [vmem:[%s340 + $0x28] sm:$0xff]
        %v425 = vld [vmem:[%s340 + $0x30] sm:$0xff]
        %v426 = vld [vmem:[%s340 + $0x38] sm:$0xff]
        %v427 = vld [vmem:[%s340 + $0x40] sm:$0xff]
        %v428 = vld [vmem:[%s340 + $0x48] sm:$0xff]
        %v429 = vld [vmem:[%s340 + $0x50] sm:$0xff]
        %v430 = vld [vmem:[%s340 + $0x58] sm:$0xff]
        %v431 = vld [vmem:[%s340 + $0x60] sm:$0xff]
        %v432 = vld [vmem:[%s340 + $0x68] sm:$0xff]
        %v433 = vld [vmem:[%s340 + $0x70] sm:$0xff]
        %v434 = vld [vmem:[%s340 + $0x78] sm:$0xff]
        %v435 = vld [vmem:[%s340 + $0x80] sm:$0xff]
        %v436 = vld [vmem:[%s340 + $0x88] sm:$0xff]
        %v437 = vld [vmem:[%s340 + $0x90] sm:$0xff]
        %v438 = vld [vmem:[%s340 + $0x98] sm:$0xff]
        %v439 = vld [vmem:[%s340 + $0xa0] sm:$0xff]
        %v440 = vld [vmem:[%s340 + $0xa8] sm:$0xff]
        %v441 = vld [vmem:[%s340 + $0xb0] sm:$0xff]
        %v442 = vld [vmem:[%s340 + $0xb8] sm:$0xff]
        %v443 = vld [vmem:[%s340 + $0xc0] sm:$0xff]
        %v444 = vld [vmem:[%s340 + $0xc8] sm:$0xff]
        %v445 = vld [vmem:[%s340 + $0xd0] sm:$0xff]
        %v446 = vld [vmem:[%s340 + $0xd8] sm:$0xff]
        %v447 = vld [vmem:[%s340 + $0xe0] sm:$0xff]
        %v448 = vld [vmem:[%s340 + $0xe8] sm:$0xff]
        %v449 = vld [vmem:[%s340 + $0xf0] sm:$0xff]
        %v450 = vld [vmem:[%s340 + $0xf8] sm:$0xff]
        %v451 = vld [vmem:[%s340 + $0x100] sm:$0xff]
        %v452 = vld [vmem:[%s340 + $0x108] sm:$0xff]
        %v453 = vld [vmem:[%s340 + $0x110] sm:$0xff]
        %v454 = vld [vmem:[%s340 + $0x118] sm:$0xff]
        %v455 = vld [vmem:[%s340 + $0x120] sm:$0xff]
        %v456 = vld [vmem:[%s340 + $0x128] sm:$0xff]
        %v457 = vld [vmem:[%s340 + $0x130] sm:$0xff]
        %v458 = vld [vmem:[%s340 + $0x138] sm:$0xff]
        %v459 = vld [vmem:[%s340 + $0x140] sm:$0xff]
        %v460 = vld [vmem:[%s340 + $0x148] sm:$0xff]
        %v461 = vld [vmem:[%s340 + $0x150] sm:$0xff]
        %v462 = vld [vmem:[%s340 + $0x158] sm:$0xff]
        %v463 = vld [vmem:[%s340 + $0x160] sm:$0xff]
        %v464 = vld [vmem:[%s340 + $0x168] sm:$0xff]
        %v465 = vld [vmem:[%s340 + $0x170] sm:$0xff]
        %v466 = vld [vmem:[%s340 + $0x178] sm:$0xff]
        %v467 = vld [vmem:[%s340 + $0x180] sm:$0xff]
        %v468 = vld [vmem:[%s340 + $0x188] sm:$0xff]
        %v469 = vld [vmem:[%s340 + $0x190] sm:$0xff]
        %v470 = vld [vmem:[%s340 + $0x198] sm:$0xff]
        %v471 = vld [vmem:[%s340 + $0x1a0] sm:$0xff]
        %v472 = vld [vmem:[%s340 + $0x1a8] sm:$0xff]
        %v473 = vld [vmem:[%s340 + $0x1b0] sm:$0xff]
        %v474 = vld [vmem:[%s340 + $0x1b8] sm:$0xff]
        %v475 = vld [vmem:[%s340 + $0x1c0] sm:$0xff]
        %v476 = vld [vmem:[%s340 + $0x1c8] sm:$0xff]
        %v477 = vld [vmem:[%s340 + $0x1d0] sm:$0xff]
        %v478 = vld [vmem:[%s340 + $0x1d8] sm:$0xff]
        %v479 = vld [vmem:[%s340 + $0x1e0] sm:$0xff]
        %v480 = vld [vmem:[%s340 + $0x1e8] sm:$0xff]
        %v481 = vld [vmem:[%s340 + $0x1f0] sm:$0xff]
        %v482 = vld [vmem:[%s340 + $0x1f8] sm:$0xff]
        %v483 = vld [vmem:[%s340 + $0x200] sm:$0xff]
        %v484 = vld [vmem:[%s340 + $0x208] sm:$0xff]
        %v485 = vld [vmem:[%s340 + $0x210] sm:$0xff]
        %v486 = vld [vmem:[%s340 + $0x218] sm:$0xff]
        %v487 = vld [vmem:[%s340 + $0x220] sm:$0xff]
        %v488 = vld [vmem:[%s340 + $0x228] sm:$0xff]
        %v489 = vld [vmem:[%s340 + $0x230] sm:$0xff]
        %v490 = vld [vmem:[%s340 + $0x238] sm:$0xff]
        %v491 = vld [vmem:[%s340 + $0x240] sm:$0xff]
        %v492 = vld [vmem:[%s340 + $0x248] sm:$0xff]
        %v493 = vld [vmem:[%s340 + $0x250] sm:$0xff]
        %v494 = vld [vmem:[%s340 + $0x258] sm:$0xff]
        %v495 = vld [vmem:[%s340 + $0x260] sm:$0xff]
        %v496 = vld [vmem:[%s340 + $0x268] sm:$0xff]
        %v497 = vld [vmem:[%s340 + $0x270] sm:$0xff]
        %v498 = vld [vmem:[%s340 + $0x278] sm:$0xff]
        %v499 = vld [vmem:[%s340 + $0x280] sm:$0xff]
        %v500 = vld [vmem:[%s340 + $0x288] sm:$0xff]
        %v501 = vld [vmem:[%s340 + $0x290] sm:$0xff]
        %v502 = vld [vmem:[%s340 + $0x298] sm:$0xff]
        %v503 = vld [vmem:[%s340 + $0x2a0] sm:$0xff]
        %v504 = vld [vmem:[%s340 + $0x2a8] sm:$0xff]
        %v505 = vld [vmem:[%s340 + $0x2b0] sm:$0xff]
        %v506 = vld [vmem:[%s340 + $0x2b8] sm:$0xff]
        %v507 = vld [vmem:[%s340 + $0x2c0] sm:$0xff]
        %v508 = vld [vmem:[%s340 + $0x2c8] sm:$0xff]
        %v509 = vld [vmem:[%s340 + $0x2d0] sm:$0xff]
        %v510 = vld [vmem:[%s340 + $0x2d8] sm:$0xff]
        %v511 = vld [vmem:[%s340 + $0x2e0] sm:$0xff]
        %v512 = vld [vmem:[%s340 + $0x2e8] sm:$0xff]
        %v513 = vld [vmem:[%s340 + $0x2f0] sm:$0xff]
        %v514 = vld [vmem:[%s340 + $0x2f8] sm:$0xff]
        %v515 = vld [vmem:[%s340 + $0x300] sm:$0xff]
        %v516 = vld [vmem:[%s340 + $0x308] sm:$0xff]
        %v517 = vld [vmem:[%s340 + $0x310] sm:$0xff]
        %v518 = vld [vmem:[%s340 + $0x318] sm:$0xff]
        %v519 = vld [vmem:[%s340 + $0x320] sm:$0xff]
        %v520 = vld [vmem:[%s340 + $0x328] sm:$0xff]
        %v521 = vld [vmem:[%s340 + $0x330] sm:$0xff]
        %v522 = vld [vmem:[%s340 + $0x338] sm:$0xff]
        %v523 = vld [vmem:[%s340 + $0x340] sm:$0xff]
        %v524 = vld [vmem:[%s340 + $0x348] sm:$0xff]
        %v525 = vld [vmem:[%s340 + $0x350] sm:$0xff]
        %v526 = vld [vmem:[%s340 + $0x358] sm:$0xff]
        %v527 = vld [vmem:[%s340 + $0x360] sm:$0xff]
        %v528 = vld [vmem:[%s340 + $0x368] sm:$0xff]
        %v529 = vld [vmem:[%s340 + $0x370] sm:$0xff]
        %v530 = vld [vmem:[%s340 + $0x378] sm:$0xff]
        %v531 = vld [vmem:[%s340 + $0x380] sm:$0xff]
        %v532 = vld [vmem:[%s340 + $0x388] sm:$0xff]
        %v533 = vld [vmem:[%s340 + $0x390] sm:$0xff]
        %v534 = vld [vmem:[%s340 + $0x398] sm:$0xff]
        %v535 = vld [vmem:[%s340 + $0x3a0] sm:$0xff]
        %v536 = vld [vmem:[%s340 + $0x3a8] sm:$0xff]
        %v537 = vld [vmem:[%s340 + $0x3b0] sm:$0xff]
        %v538 = vld [vmem:[%s340 + $0x3b8] sm:$0xff]
        %v539 = vld [vmem:[%s340 + $0x3c0] sm:$0xff]
        %v540 = vld [vmem:[%s340 + $0x3c8] sm:$0xff]
        %v541 = vld [vmem:[%s340 + $0x3d0] sm:$0xff]
        %v542 = vld [vmem:[%s340 + $0x3d8] sm:$0xff]
        %v543 = vld [vmem:[%s340 + $0x3e0] sm:$0xff]
        %v544 = vld [vmem:[%s340 + $0x3e8] sm:$0xff]
        %v545 = vld [vmem:[%s340 + $0x3f0] sm:$0xff]
        %v546 = vld [vmem:[%s340 + $0x3f8] sm:$0xff]
        %v547 = vld [vmem:[%s340 + $0x400] sm:$0xff]
        %v548 = vld [vmem:[%s340 + $0x408] sm:$0xff]
        %v549 = vld [vmem:[%s340 + $0x410] sm:$0xff]
        %v550 = vld [vmem:[%s340 + $0x418] sm:$0xff]
        %v551 = vld [vmem:[%s340 + $0x420] sm:$0xff]
        %v552 = vld [vmem:[%s340 + $0x428] sm:$0xff]
        %v553 = vld [vmem:[%s340 + $0x430] sm:$0xff]
        %v554 = vld [vmem:[%s340 + $0x438] sm:$0xff]
        %v555 = vld [vmem:[%s340 + $0x440] sm:$0xff]
        %v556 = vld [vmem:[%s340 + $0x448] sm:$0xff]
        %v557 = vld [vmem:[%s340 + $0x450] sm:$0xff]
        %v558 = vld [vmem:[%s340 + $0x458] sm:$0xff]
        %v559 = vld [vmem:[%s340 + $0x460] sm:$0xff]
        %v560 = vld [vmem:[%s340 + $0x468] sm:$0xff]
        %v561 = vld [vmem:[%s340 + $0x470] sm:$0xff]
        %v562 = vld [vmem:[%s340 + $0x478] sm:$0xff]
        %v563 = vld [vmem:[%s340 + $0x480] sm:$0xff]
        %v564 = vld [vmem:[%s340 + $0x488] sm:$0xff]
        %v565 = vld [vmem:[%s340 + $0x490] sm:$0xff]
        %v566 = vld [vmem:[%s340 + $0x498] sm:$0xff]
        %v567 = vld [vmem:[%s340 + $0x4a0] sm:$0xff]
        %v568 = vld [vmem:[%s340 + $0x4a8] sm:$0xff]
        %v569 = vld [vmem:[%s340 + $0x4b0] sm:$0xff]
        %v570 = vld [vmem:[%s340 + $0x4b8] sm:$0xff]
        %v571 = vld [vmem:[%s340 + $0x4c0] sm:$0xff]
        %v572 = vld [vmem:[%s340 + $0x4c8] sm:$0xff]
        %v573 = vld [vmem:[%s340 + $0x4d0] sm:$0xff]
        %v574 = vld [vmem:[%s340 + $0x4d8] sm:$0xff]
        %v575 = vld [vmem:[%s340 + $0x4e0] sm:$0xff]
        %v576 = vld [vmem:[%s340 + $0x4e8] sm:$0xff]
        %v577 = vld [vmem:[%s340 + $0x4f0] sm:$0xff]
        %v578 = vld [vmem:[%s340 + $0x4f8] sm:$0xff]
        %v579 = vld [vmem:[%s340 + $0x500] sm:$0xff]
        %v580 = vld [vmem:[%s340 + $0x508] sm:$0xff]
        %v581 = vld [vmem:[%s340 + $0x510] sm:$0xff]
        %v582 = vld [vmem:[%s340 + $0x518] sm:$0xff]
        %v583 = vld [vmem:[%s340 + $0x520] sm:$0xff]
        %v584 = vld [vmem:[%s340 + $0x528] sm:$0xff]
        %v585 = vld [vmem:[%s340 + $0x530] sm:$0xff]
        %v586 = vld [vmem:[%s340 + $0x538] sm:$0xff]
        %v587 = vld [vmem:[%s340 + $0x540] sm:$0xff]
        %v588 = vld [vmem:[%s340 + $0x548] sm:$0xff]
        %v589 = vld [vmem:[%s340 + $0x550] sm:$0xff]
        %v590 = vld [vmem:[%s340 + $0x558] sm:$0xff]
        %v591 = vld [vmem:[%s340 + $0x560] sm:$0xff]
        %v592 = vld [vmem:[%s340 + $0x568] sm:$0xff]
        %v593 = vld [vmem:[%s340 + $0x570] sm:$0xff]
        %v594 = vld [vmem:[%s340 + $0x578] sm:$0xff]
        %v595 = vld [vmem:[%s340 + $0x580] sm:$0xff]
        %v596 = vld [vmem:[%s340 + $0x588] sm:$0xff]
        %v597 = vld [vmem:[%s340 + $0x590] sm:$0xff]
        %v598 = vld [vmem:[%s340 + $0x598] sm:$0xff]
        %v599 = vld [vmem:[%s340 + $0x5a0] sm:$0xff]
        %v600 = vld [vmem:[%s340 + $0x5a8] sm:$0xff]
        %v601 = vld [vmem:[%s340 + $0x5b0] sm:$0xff]
        %v602 = vld [vmem:[%s340 + $0x5b8] sm:$0xff]
        %v603 = vld [vmem:[%s340 + $0x5c0] sm:$0xff]
        %v604 = vld [vmem:[%s340 + $0x5c8] sm:$0xff]
        %v605 = vld [vmem:[%s340 + $0x5d0] sm:$0xff]
        %v606 = vld [vmem:[%s340 + $0x5d8] sm:$0xff]
        %v607 = vld [vmem:[%s340 + $0x5e0] sm:$0xff]
        %v608 = vld [vmem:[%s340 + $0x5e8] sm:$0xff]
        %v609 = vld [vmem:[%s340 + $0x5f0] sm:$0xff]
        %v610 = vld [vmem:[%s340 + $0x5f8] sm:$0xff]
        %v611 = vld [vmem:[%s340 + $0x600] sm:$0xff]
        %v612 = vld [vmem:[%s340 + $0x608] sm:$0xff]
        %v613 = vld [vmem:[%s340 + $0x610] sm:$0xff]
        %v614 = vld [vmem:[%s340 + $0x618] sm:$0xff]
        %v615 = vld [vmem:[%s340 + $0x620] sm:$0xff]
        %v616 = vld [vmem:[%s340 + $0x628] sm:$0xff]
        %v617 = vld [vmem:[%s340 + $0x630] sm:$0xff]
        %v618 = vld [vmem:[%s340 + $0x638] sm:$0xff]
        %v619 = vld [vmem:[%s340 + $0x640] sm:$0xff]
        %v620 = vld [vmem:[%s340 + $0x648] sm:$0xff]
        %v621 = vld [vmem:[%s340 + $0x650] sm:$0xff]
        %v622 = vld [vmem:[%s340 + $0x658] sm:$0xff]
        %v623 = vld [vmem:[%s340 + $0x660] sm:$0xff]
        %v624 = vld [vmem:[%s340 + $0x668] sm:$0xff]
        %v625 = vld [vmem:[%s340 + $0x670] sm:$0xff]
        %v626 = vld [vmem:[%s340 + $0x678] sm:$0xff]
        %v627 = vld [vmem:[%s340 + $0x680] sm:$0xff]
        %v628 = vld [vmem:[%s340 + $0x688] sm:$0xff]
        %v629 = vld [vmem:[%s340 + $0x690] sm:$0xff]
        %v630 = vld [vmem:[%s340 + $0x698] sm:$0xff]
        %v631 = vld [vmem:[%s340 + $0x6a0] sm:$0xff]
        %v632 = vld [vmem:[%s340 + $0x6a8] sm:$0xff]
        %v633 = vld [vmem:[%s340 + $0x6b0] sm:$0xff]
        %v634 = vld [vmem:[%s340 + $0x6b8] sm:$0xff]
        %v635 = vld [vmem:[%s340 + $0x6c0] sm:$0xff]
        %v636 = vld [vmem:[%s340 + $0x6c8] sm:$0xff]
        %v637 = vld [vmem:[%s340 + $0x6d0] sm:$0xff]
        %v638 = vld [vmem:[%s340 + $0x6d8] sm:$0xff]
        %v639 = vld [vmem:[%s340 + $0x6e0] sm:$0xff]
        %v640 = vld [vmem:[%s340 + $0x6e8] sm:$0xff]
        %v641 = vld [vmem:[%s340 + $0x6f0] sm:$0xff]
        %v642 = vld [vmem:[%s340 + $0x6f8] sm:$0xff]
        %v643 = vld [vmem:[%s340 + $0x700] sm:$0xff]
        %v644 = vld [vmem:[%s340 + $0x708] sm:$0xff]
        %v645 = vld [vmem:[%s340 + $0x710] sm:$0xff]
        %v646 = vld [vmem:[%s340 + $0x718] sm:$0xff]
        %v647 = vld [vmem:[%s340 + $0x720] sm:$0xff]
        %v648 = vld [vmem:[%s340 + $0x728] sm:$0xff]
        %v649 = vld [vmem:[%s340 + $0x730] sm:$0xff]
        %v650 = vld [vmem:[%s340 + $0x738] sm:$0xff]
        %v651 = vld [vmem:[%s340 + $0x740] sm:$0xff]
        %v652 = vld [vmem:[%s340 + $0x748] sm:$0xff]
        %v653 = vld [vmem:[%s340 + $0x750] sm:$0xff]
        %v654 = vld [vmem:[%s340 + $0x758] sm:$0xff]
        %v655 = vld [vmem:[%s340 + $0x760] sm:$0xff]
        %v656 = vld [vmem:[%s340 + $0x768] sm:$0xff]
        %v657 = vld [vmem:[%s340 + $0x770] sm:$0xff]
        %v658 = vld [vmem:[%s340 + $0x778] sm:$0xff]
        %v659 = vld [vmem:[%s340 + $0x780] sm:$0xff]
        %v660 = vld [vmem:[%s340 + $0x788] sm:$0xff]
        %v661 = vld [vmem:[%s340 + $0x790] sm:$0xff]
        %v662 = vld [vmem:[%s340 + $0x798] sm:$0xff]
        %v663 = vld [vmem:[%s340 + $0x7a0] sm:$0xff]
        %v664 = vld [vmem:[%s340 + $0x7a8] sm:$0xff]
        %v665 = vld [vmem:[%s340 + $0x7b0] sm:$0xff]
        %v666 = vld [vmem:[%s340 + $0x7b8] sm:$0xff]
        %v667 = vld [vmem:[%s340 + $0x7c0] sm:$0xff]
        %v668 = vld [vmem:[%s340 + $0x7c8] sm:$0xff]
        %v669 = vld [vmem:[%s340 + $0x7d0] sm:$0xff]
        %v670 = vld [vmem:[%s340 + $0x7d8] sm:$0xff]
        %v671 = vld [vmem:[%s340 + $0x7e0] sm:$0xff]
        %v672 = vld [vmem:[%s340 + $0x7e8] sm:$0xff]
        %v673 = vld [vmem:[%s340 + $0x7f0] sm:$0xff]
        %v674 = vld [vmem:[%s340 + $0x7f8] sm:$0xff]
        %v679 = vunpack.c.l.b16 %v415
        %v680 = vunpack.c.h.b16 %v415
        %v681 = vunpack.c.l.b16 %v416
        %v682 = vunpack.c.h.b16 %v416
        %v683 = vunpack.c.l.b16 %v417
        %v684 = vunpack.c.h.b16 %v417
        %v685 = vunpack.c.l.b16 %v418
        %v686 = vunpack.c.h.b16 %v418
        %v687 = vpack.c.b16 %v679, %v679
        %v688 = vpack.c.b16 %v680, %v680
        %v689 = vpack.c.b16 %v681, %v681
        %v690 = vpack.c.b16 %v682, %v682
        %v691 = vpack.c.b16 %v683, %v683
        %v692 = vpack.c.b16 %v684, %v684
        %v693 = vpack.c.b16 %v685, %v685
        %v694 = vpack.c.b16 %v686, %v686
        %v959 = vunpack.c.l.b16 %v419
        %v960 = vunpack.c.h.b16 %v419
        %v961 = vunpack.c.l.b16 %v420
        %v962 = vunpack.c.h.b16 %v420
        %v963 = vunpack.c.l.b16 %v421
        %v964 = vunpack.c.h.b16 %v421
        %v965 = vunpack.c.l.b16 %v422
        %v966 = vunpack.c.h.b16 %v422
        %v967 = vunpack.c.l.b16 %v423
        %v968 = vunpack.c.h.b16 %v423
        %v969 = vunpack.c.l.b16 %v424
        %v970 = vunpack.c.h.b16 %v424
        %v971 = vunpack.c.l.b16 %v425
        %v972 = vunpack.c.h.b16 %v425
        %v973 = vunpack.c.l.b16 %v426
        %v974 = vunpack.c.h.b16 %v426
        %v975 = vunpack.c.l.b16 %v427
        %v976 = vunpack.c.h.b16 %v427
        %v977 = vunpack.c.l.b16 %v428
        %v978 = vunpack.c.h.b16 %v428
        %v979 = vunpack.c.l.b16 %v429
        %v980 = vunpack.c.h.b16 %v429
        %v981 = vunpack.c.l.b16 %v430
        %v982 = vunpack.c.h.b16 %v430
        %v983 = vunpack.c.l.b16 %v431
        %v984 = vunpack.c.h.b16 %v431
        %v985 = vunpack.c.l.b16 %v432
        %v986 = vunpack.c.h.b16 %v432
        %v987 = vunpack.c.l.b16 %v433
        %v988 = vunpack.c.h.b16 %v433
        %v989 = vunpack.c.l.b16 %v434
        %v990 = vunpack.c.h.b16 %v434
        %v991 = vunpack.c.l.b16 %v435
        %v992 = vunpack.c.h.b16 %v435
        %v993 = vunpack.c.l.b16 %v436
        %v994 = vunpack.c.h.b16 %v436
        %v995 = vunpack.c.l.b16 %v437
        %v996 = vunpack.c.h.b16 %v437
        %v997 = vunpack.c.l.b16 %v438
        %v998 = vunpack.c.h.b16 %v438
        %v999 = vunpack.c.l.b16 %v439
        %v1000 = vunpack.c.h.b16 %v439
        %v1001 = vunpack.c.l.b16 %v440
        %v1002 = vunpack.c.h.b16 %v440
        %v1003 = vunpack.c.l.b16 %v441
        %v1004 = vunpack.c.h.b16 %v441
        %v1005 = vunpack.c.l.b16 %v442
        %v1006 = vunpack.c.h.b16 %v442
        %v1007 = vunpack.c.l.b16 %v443
        %v1008 = vunpack.c.h.b16 %v443
        %v1009 = vunpack.c.l.b16 %v444
        %v1010 = vunpack.c.h.b16 %v444
        %v1011 = vunpack.c.l.b16 %v445
        %v1012 = vunpack.c.h.b16 %v445
        %v1013 = vunpack.c.l.b16 %v446
        %v1014 = vunpack.c.h.b16 %v446
        %v1015 = vunpack.c.l.b16 %v447
        %v1016 = vunpack.c.h.b16 %v447
        %v1017 = vunpack.c.l.b16 %v448
        %v1018 = vunpack.c.h.b16 %v448
        %v1019 = vunpack.c.l.b16 %v449
        %v1020 = vunpack.c.h.b16 %v449
        %v1021 = vunpack.c.l.b16 %v450
        %v1022 = vunpack.c.h.b16 %v450
        %v1023 = vunpack.c.l.b16 %v451
        %v1024 = vunpack.c.h.b16 %v451
        %v1025 = vunpack.c.l.b16 %v452
        %v1026 = vunpack.c.h.b16 %v452
        %v1027 = vunpack.c.l.b16 %v453
        %v1028 = vunpack.c.h.b16 %v453
        %v1029 = vunpack.c.l.b16 %v454
        %v1030 = vunpack.c.h.b16 %v454
        %v1031 = vunpack.c.l.b16 %v455
        %v1032 = vunpack.c.h.b16 %v455
        %v1033 = vunpack.c.l.b16 %v456
        %v1034 = vunpack.c.h.b16 %v456
        %v1035 = vunpack.c.l.b16 %v457
        %v1036 = vunpack.c.h.b16 %v457
        %v1037 = vunpack.c.l.b16 %v458
        %v1038 = vunpack.c.h.b16 %v458
        %v1039 = vunpack.c.l.b16 %v459
        %v1040 = vunpack.c.h.b16 %v459
        %v1041 = vunpack.c.l.b16 %v460
        %v1042 = vunpack.c.h.b16 %v460
        %v1043 = vunpack.c.l.b16 %v461
        %v1044 = vunpack.c.h.b16 %v461
        %v1045 = vunpack.c.l.b16 %v462
        %v1046 = vunpack.c.h.b16 %v462
        %v1047 = vunpack.c.l.b16 %v463
        %v1048 = vunpack.c.h.b16 %v463
        %v1049 = vunpack.c.l.b16 %v464
        %v1050 = vunpack.c.h.b16 %v464
        %v1051 = vunpack.c.l.b16 %v465
        %v1052 = vunpack.c.h.b16 %v465
        %v1053 = vunpack.c.l.b16 %v466
        %v1054 = vunpack.c.h.b16 %v466
        %v1055 = vunpack.c.l.b16 %v467
        %v1056 = vunpack.c.h.b16 %v467
        %v1057 = vunpack.c.l.b16 %v468
        %v1058 = vunpack.c.h.b16 %v468
        %v1059 = vunpack.c.l.b16 %v469
        %v1060 = vunpack.c.h.b16 %v469
        %v1061 = vunpack.c.l.b16 %v470
        %v1062 = vunpack.c.h.b16 %v470
        %v1063 = vunpack.c.l.b16 %v471
        %v1064 = vunpack.c.h.b16 %v471
        %v1065 = vunpack.c.l.b16 %v472
        %v1066 = vunpack.c.h.b16 %v472
        %v1067 = vunpack.c.l.b16 %v473
        %v1068 = vunpack.c.h.b16 %v473
        %v1069 = vunpack.c.l.b16 %v474
        %v1070 = vunpack.c.h.b16 %v474
        %v1071 = vunpack.c.l.b16 %v475
        %v1072 = vunpack.c.h.b16 %v475
        %v1073 = vunpack.c.l.b16 %v476
        %v1074 = vunpack.c.h.b16 %v476
        %v1075 = vunpack.c.l.b16 %v477
        %v1076 = vunpack.c.h.b16 %v477
        %v1077 = vunpack.c.l.b16 %v478
        %v1078 = vunpack.c.h.b16 %v478
        %v1079 = vunpack.c.l.b16 %v479
        %v1080 = vunpack.c.h.b16 %v479
        %v1081 = vunpack.c.l.b16 %v480
        %v1082 = vunpack.c.h.b16 %v480
        %v1083 = vunpack.c.l.b16 %v481
        %v1084 = vunpack.c.h.b16 %v481
        %v1085 = vunpack.c.l.b16 %v482
        %v1086 = vunpack.c.h.b16 %v482
        %v1087 = vunpack.c.l.b16 %v483
        %v1088 = vunpack.c.h.b16 %v483
        %v1089 = vunpack.c.l.b16 %v484
        %v1090 = vunpack.c.h.b16 %v484
        %v1091 = vunpack.c.l.b16 %v485
        %v1092 = vunpack.c.h.b16 %v485
        %v1093 = vunpack.c.l.b16 %v486
        %v1094 = vunpack.c.h.b16 %v486
        %v1095 = vunpack.c.l.b16 %v487
        %v1096 = vunpack.c.h.b16 %v487
        %v1097 = vunpack.c.l.b16 %v488
        %v1098 = vunpack.c.h.b16 %v488
        %v1099 = vunpack.c.l.b16 %v489
        %v1100 = vunpack.c.h.b16 %v489
        %v1101 = vunpack.c.l.b16 %v490
        %v1102 = vunpack.c.h.b16 %v490
        %v1103 = vunpack.c.l.b16 %v491
        %v1104 = vunpack.c.h.b16 %v491
        %v1105 = vunpack.c.l.b16 %v492
        %v1106 = vunpack.c.h.b16 %v492
        %v1107 = vunpack.c.l.b16 %v493
        %v1108 = vunpack.c.h.b16 %v493
        %v1109 = vunpack.c.l.b16 %v494
        %v1110 = vunpack.c.h.b16 %v494
        %v1111 = vunpack.c.l.b16 %v495
        %v1112 = vunpack.c.h.b16 %v495
        %v1113 = vunpack.c.l.b16 %v496
        %v1114 = vunpack.c.h.b16 %v496
        %v1115 = vunpack.c.l.b16 %v497
        %v1116 = vunpack.c.h.b16 %v497
        %v1117 = vunpack.c.l.b16 %v498
        %v1118 = vunpack.c.h.b16 %v498
        %v1119 = vunpack.c.l.b16 %v499
        %v1120 = vunpack.c.h.b16 %v499
        %v1121 = vunpack.c.l.b16 %v500
        %v1122 = vunpack.c.h.b16 %v500
        %v1123 = vunpack.c.l.b16 %v501
        %v1124 = vunpack.c.h.b16 %v501
        %v1125 = vunpack.c.l.b16 %v502
        %v1126 = vunpack.c.h.b16 %v502
        %v1127 = vunpack.c.l.b16 %v503
        %v1128 = vunpack.c.h.b16 %v503
        %v1129 = vunpack.c.l.b16 %v504
        %v1130 = vunpack.c.h.b16 %v504
        %v1131 = vunpack.c.l.b16 %v505
        %v1132 = vunpack.c.h.b16 %v505
        %v1133 = vunpack.c.l.b16 %v506
        %v1134 = vunpack.c.h.b16 %v506
        %v1135 = vunpack.c.l.b16 %v507
        %v1136 = vunpack.c.h.b16 %v507
        %v1137 = vunpack.c.l.b16 %v508
        %v1138 = vunpack.c.h.b16 %v508
        %v1139 = vunpack.c.l.b16 %v509
        %v1140 = vunpack.c.h.b16 %v509
        %v1141 = vunpack.c.l.b16 %v510
        %v1142 = vunpack.c.h.b16 %v510
        %v1143 = vunpack.c.l.b16 %v511
        %v1144 = vunpack.c.h.b16 %v511
        %v1145 = vunpack.c.l.b16 %v512
        %v1146 = vunpack.c.h.b16 %v512
        %v1147 = vunpack.c.l.b16 %v513
        %v1148 = vunpack.c.h.b16 %v513
        %v1149 = vunpack.c.l.b16 %v514
        %v1150 = vunpack.c.h.b16 %v514
        %v1151 = vunpack.c.l.b16 %v515
        %v1152 = vunpack.c.h.b16 %v515
        %v1153 = vunpack.c.l.b16 %v516
        %v1154 = vunpack.c.h.b16 %v516
        %v1155 = vunpack.c.l.b16 %v517
        %v1156 = vunpack.c.h.b16 %v517
        %v1157 = vunpack.c.l.b16 %v518
        %v1158 = vunpack.c.h.b16 %v518
        %v1159 = vunpack.c.l.b16 %v519
        %v1160 = vunpack.c.h.b16 %v519
        %v1161 = vunpack.c.l.b16 %v520
        %v1162 = vunpack.c.h.b16 %v520
        %v1163 = vunpack.c.l.b16 %v521
        %v1164 = vunpack.c.h.b16 %v521
        %v1165 = vunpack.c.l.b16 %v522
        %v1166 = vunpack.c.h.b16 %v522
        %v1167 = vunpack.c.l.b16 %v523
        %v1168 = vunpack.c.h.b16 %v523
        %v1169 = vunpack.c.l.b16 %v524
        %v1170 = vunpack.c.h.b16 %v524
        %v1171 = vunpack.c.l.b16 %v525
        %v1172 = vunpack.c.h.b16 %v525
        %v1173 = vunpack.c.l.b16 %v526
        %v1174 = vunpack.c.h.b16 %v526
        %v1175 = vunpack.c.l.b16 %v527
        %v1176 = vunpack.c.h.b16 %v527
        %v1177 = vunpack.c.l.b16 %v528
        %v1178 = vunpack.c.h.b16 %v528
        %v1179 = vunpack.c.l.b16 %v529
        %v1180 = vunpack.c.h.b16 %v529
        %v1181 = vunpack.c.l.b16 %v530
        %v1182 = vunpack.c.h.b16 %v530
        %v1183 = vunpack.c.l.b16 %v531
        %v1184 = vunpack.c.h.b16 %v531
        %v1185 = vunpack.c.l.b16 %v532
        %v1186 = vunpack.c.h.b16 %v532
        %v1187 = vunpack.c.l.b16 %v533
        %v1188 = vunpack.c.h.b16 %v533
        %v1189 = vunpack.c.l.b16 %v534
        %v1190 = vunpack.c.h.b16 %v534
        %v1191 = vunpack.c.l.b16 %v535
        %v1192 = vunpack.c.h.b16 %v535
        %v1193 = vunpack.c.l.b16 %v536
        %v1194 = vunpack.c.h.b16 %v536
        %v1195 = vunpack.c.l.b16 %v537
        %v1196 = vunpack.c.h.b16 %v537
        %v1197 = vunpack.c.l.b16 %v538
        %v1198 = vunpack.c.h.b16 %v538
        %v1199 = vunpack.c.l.b16 %v539
        %v1200 = vunpack.c.h.b16 %v539
        %v1201 = vunpack.c.l.b16 %v540
        %v1202 = vunpack.c.h.b16 %v540
        %v1203 = vunpack.c.l.b16 %v541
        %v1204 = vunpack.c.h.b16 %v541
        %v1205 = vunpack.c.l.b16 %v542
        %v1206 = vunpack.c.h.b16 %v542
        %v1207 = vunpack.c.l.b16 %v543
        %v1208 = vunpack.c.h.b16 %v543
        %v1209 = vunpack.c.l.b16 %v544
        %v1210 = vunpack.c.h.b16 %v544
        %v1211 = vunpack.c.l.b16 %v545
        %v1212 = vunpack.c.h.b16 %v545
        %v1213 = vunpack.c.l.b16 %v546
        %v1214 = vunpack.c.h.b16 %v546
        %v1215 = vunpack.c.l.b16 %v547
        %v1216 = vunpack.c.h.b16 %v547
        %v1217 = vunpack.c.l.b16 %v548
        %v1218 = vunpack.c.h.b16 %v548
        %v1219 = vunpack.c.l.b16 %v549
        %v1220 = vunpack.c.h.b16 %v549
        %v1221 = vunpack.c.l.b16 %v550
        %v1222 = vunpack.c.h.b16 %v550
        %v1223 = vunpack.c.l.b16 %v551
        %v1224 = vunpack.c.h.b16 %v551
        %v1225 = vunpack.c.l.b16 %v552
        %v1226 = vunpack.c.h.b16 %v552
        %v1227 = vunpack.c.l.b16 %v553
        %v1228 = vunpack.c.h.b16 %v553
        %v1229 = vunpack.c.l.b16 %v554
        %v1230 = vunpack.c.h.b16 %v554
        %v1231 = vunpack.c.l.b16 %v555
        %v1232 = vunpack.c.h.b16 %v555
        %v1233 = vunpack.c.l.b16 %v556
        %v1234 = vunpack.c.h.b16 %v556
        %v1235 = vunpack.c.l.b16 %v557
        %v1236 = vunpack.c.h.b16 %v557
        %v1237 = vunpack.c.l.b16 %v558
        %v1238 = vunpack.c.h.b16 %v558
        %v1239 = vunpack.c.l.b16 %v559
        %v1240 = vunpack.c.h.b16 %v559
        %v1241 = vunpack.c.l.b16 %v560
        %v1242 = vunpack.c.h.b16 %v560
        %v1243 = vunpack.c.l.b16 %v561
        %v1244 = vunpack.c.h.b16 %v561
        %v1245 = vunpack.c.l.b16 %v562
        %v1246 = vunpack.c.h.b16 %v562
        %v1247 = vunpack.c.l.b16 %v563
        %v1248 = vunpack.c.h.b16 %v563
        %v1249 = vunpack.c.l.b16 %v564
        %v1250 = vunpack.c.h.b16 %v564
        %v1251 = vunpack.c.l.b16 %v565
        %v1252 = vunpack.c.h.b16 %v565
        %v1253 = vunpack.c.l.b16 %v566
        %v1254 = vunpack.c.h.b16 %v566
        %v1255 = vunpack.c.l.b16 %v567
        %v1256 = vunpack.c.h.b16 %v567
        %v1257 = vunpack.c.l.b16 %v568
        %v1258 = vunpack.c.h.b16 %v568
        %v1259 = vunpack.c.l.b16 %v569
        %v1260 = vunpack.c.h.b16 %v569
        %v1261 = vunpack.c.l.b16 %v570
        %v1262 = vunpack.c.h.b16 %v570
        %v1263 = vunpack.c.l.b16 %v571
        %v1264 = vunpack.c.h.b16 %v571
        %v1265 = vunpack.c.l.b16 %v572
        %v1266 = vunpack.c.h.b16 %v572
        %v1267 = vunpack.c.l.b16 %v573
        %v1268 = vunpack.c.h.b16 %v573
        %v1269 = vunpack.c.l.b16 %v574
        %v1270 = vunpack.c.h.b16 %v574
        %v1271 = vunpack.c.l.b16 %v575
        %v1272 = vunpack.c.h.b16 %v575
        %v1273 = vunpack.c.l.b16 %v576
        %v1274 = vunpack.c.h.b16 %v576
        %v1275 = vunpack.c.l.b16 %v577
        %v1276 = vunpack.c.h.b16 %v577
        %v1277 = vunpack.c.l.b16 %v578
        %v1278 = vunpack.c.h.b16 %v578
        %v1279 = vunpack.c.l.b16 %v579
        %v1280 = vunpack.c.h.b16 %v579
        %v1281 = vunpack.c.l.b16 %v580
        %v1282 = vunpack.c.h.b16 %v580
        %v1283 = vunpack.c.l.b16 %v581
        %v1284 = vunpack.c.h.b16 %v581
        %v1285 = vunpack.c.l.b16 %v582
        %v1286 = vunpack.c.h.b16 %v582
        %v1287 = vunpack.c.l.b16 %v583
        %v1288 = vunpack.c.h.b16 %v583
        %v1289 = vunpack.c.l.b16 %v584
        %v1290 = vunpack.c.h.b16 %v584
        %v1291 = vunpack.c.l.b16 %v585
        %v1292 = vunpack.c.h.b16 %v585
        %v1293 = vunpack.c.l.b16 %v586
        %v1294 = vunpack.c.h.b16 %v586
        %v1295 = vunpack.c.l.b16 %v587
        %v1296 = vunpack.c.h.b16 %v587
        %v1297 = vunpack.c.l.b16 %v588
        %v1298 = vunpack.c.h.b16 %v588
        %v1299 = vunpack.c.l.b16 %v589
        %v1300 = vunpack.c.h.b16 %v589
        %v1301 = vunpack.c.l.b16 %v590
        %v1302 = vunpack.c.h.b16 %v590
        %v1303 = vunpack.c.l.b16 %v591
        %v1304 = vunpack.c.h.b16 %v591
        %v1305 = vunpack.c.l.b16 %v592
        %v1306 = vunpack.c.h.b16 %v592
        %v1307 = vunpack.c.l.b16 %v593
        %v1308 = vunpack.c.h.b16 %v593
        %v1309 = vunpack.c.l.b16 %v594
        %v1310 = vunpack.c.h.b16 %v594
        %v1311 = vunpack.c.l.b16 %v595
        %v1312 = vunpack.c.h.b16 %v595
        %v1313 = vunpack.c.l.b16 %v596
        %v1314 = vunpack.c.h.b16 %v596
        %v1315 = vunpack.c.l.b16 %v597
        %v1316 = vunpack.c.h.b16 %v597
        %v1317 = vunpack.c.l.b16 %v598
        %v1318 = vunpack.c.h.b16 %v598
        %v1319 = vunpack.c.l.b16 %v599
        %v1320 = vunpack.c.h.b16 %v599
        %v1321 = vunpack.c.l.b16 %v600
        %v1322 = vunpack.c.h.b16 %v600
        %v1323 = vunpack.c.l.b16 %v601
        %v1324 = vunpack.c.h.b16 %v601
        %v1325 = vunpack.c.l.b16 %v602
        %v1326 = vunpack.c.h.b16 %v602
        %v1327 = vunpack.c.l.b16 %v603
        %v1328 = vunpack.c.h.b16 %v603
        %v1329 = vunpack.c.l.b16 %v604
        %v1330 = vunpack.c.h.b16 %v604
        %v1331 = vunpack.c.l.b16 %v605
        %v1332 = vunpack.c.h.b16 %v605
        %v1333 = vunpack.c.l.b16 %v606
        %v1334 = vunpack.c.h.b16 %v606
        %v1335 = vunpack.c.l.b16 %v607
        %v1336 = vunpack.c.h.b16 %v607
        %v1337 = vunpack.c.l.b16 %v608
        %v1338 = vunpack.c.h.b16 %v608
        %v1339 = vunpack.c.l.b16 %v609
        %v1340 = vunpack.c.h.b16 %v609
        %v1341 = vunpack.c.l.b16 %v610
        %v1342 = vunpack.c.h.b16 %v610
        %v1343 = vunpack.c.l.b16 %v611
        %v1344 = vunpack.c.h.b16 %v611
        %v1345 = vunpack.c.l.b16 %v612
        %v1346 = vunpack.c.h.b16 %v612
        %v1347 = vunpack.c.l.b16 %v613
        %v1348 = vunpack.c.h.b16 %v613
        %v1349 = vunpack.c.l.b16 %v614
        %v1350 = vunpack.c.h.b16 %v614
        %v1351 = vunpack.c.l.b16 %v615
        %v1352 = vunpack.c.h.b16 %v615
        %v1353 = vunpack.c.l.b16 %v616
        %v1354 = vunpack.c.h.b16 %v616
        %v1355 = vunpack.c.l.b16 %v617
        %v1356 = vunpack.c.h.b16 %v617
        %v1357 = vunpack.c.l.b16 %v618
        %v1358 = vunpack.c.h.b16 %v618
        %v1359 = vunpack.c.l.b16 %v619
        %v1360 = vunpack.c.h.b16 %v619
        %v1361 = vunpack.c.l.b16 %v620
        %v1362 = vunpack.c.h.b16 %v620
        %v1363 = vunpack.c.l.b16 %v621
        %v1364 = vunpack.c.h.b16 %v621
        %v1365 = vunpack.c.l.b16 %v622
        %v1366 = vunpack.c.h.b16 %v622
        %v1367 = vunpack.c.l.b16 %v623
        %v1368 = vunpack.c.h.b16 %v623
        %v1369 = vunpack.c.l.b16 %v624
        %v1370 = vunpack.c.h.b16 %v624
        %v1371 = vunpack.c.l.b16 %v625
        %v1372 = vunpack.c.h.b16 %v625
        %v1373 = vunpack.c.l.b16 %v626
        %v1374 = vunpack.c.h.b16 %v626
        %v1375 = vunpack.c.l.b16 %v627
        %v1376 = vunpack.c.h.b16 %v627
        %v1377 = vunpack.c.l.b16 %v628
        %v1378 = vunpack.c.h.b16 %v628
        %v1379 = vunpack.c.l.b16 %v629
        %v1380 = vunpack.c.h.b16 %v629
        %v1381 = vunpack.c.l.b16 %v630
        %v1382 = vunpack.c.h.b16 %v630
        %v1383 = vunpack.c.l.b16 %v631
        %v1384 = vunpack.c.h.b16 %v631
        %v1385 = vunpack.c.l.b16 %v632
        %v1386 = vunpack.c.h.b16 %v632
        %v1387 = vunpack.c.l.b16 %v633
        %v1388 = vunpack.c.h.b16 %v633
        %v1389 = vunpack.c.l.b16 %v634
        %v1390 = vunpack.c.h.b16 %v634
        %v1391 = vunpack.c.l.b16 %v635
        %v1392 = vunpack.c.h.b16 %v635
        %v1393 = vunpack.c.l.b16 %v636
        %v1394 = vunpack.c.h.b16 %v636
        %v1395 = vunpack.c.l.b16 %v637
        %v1396 = vunpack.c.h.b16 %v637
        %v1397 = vunpack.c.l.b16 %v638
        %v1398 = vunpack.c.h.b16 %v638
        %v1399 = vunpack.c.l.b16 %v639
        %v1400 = vunpack.c.h.b16 %v639
        %v1401 = vunpack.c.l.b16 %v640
        %v1402 = vunpack.c.h.b16 %v640
        %v1403 = vunpack.c.l.b16 %v641
        %v1404 = vunpack.c.h.b16 %v641
        %v1405 = vunpack.c.l.b16 %v642
        %v1406 = vunpack.c.h.b16 %v642
        %v1407 = vunpack.c.l.b16 %v643
        %v1408 = vunpack.c.h.b16 %v643
        %v1409 = vunpack.c.l.b16 %v644
        %v1410 = vunpack.c.h.b16 %v644
        %v1411 = vunpack.c.l.b16 %v645
        %v1412 = vunpack.c.h.b16 %v645
        %v1413 = vunpack.c.l.b16 %v646
        %v1414 = vunpack.c.h.b16 %v646
        %v1415 = vunpack.c.l.b16 %v647
        %v1416 = vunpack.c.h.b16 %v647
        %v1417 = vunpack.c.l.b16 %v648
        %v1418 = vunpack.c.h.b16 %v648
        %v1419 = vunpack.c.l.b16 %v649
        %v1420 = vunpack.c.h.b16 %v649
        %v1421 = vunpack.c.l.b16 %v650
        %v1422 = vunpack.c.h.b16 %v650
        %v1423 = vunpack.c.l.b16 %v651
        %v1424 = vunpack.c.h.b16 %v651
        %v1425 = vunpack.c.l.b16 %v652
        %v1426 = vunpack.c.h.b16 %v652
        %v1427 = vunpack.c.l.b16 %v653
        %v1428 = vunpack.c.h.b16 %v653
        %v1429 = vunpack.c.l.b16 %v654
        %v1430 = vunpack.c.h.b16 %v654
        %v1431 = vunpack.c.l.b16 %v655
        %v1432 = vunpack.c.h.b16 %v655
        %v1433 = vunpack.c.l.b16 %v656
        %v1434 = vunpack.c.h.b16 %v656
        %v1435 = vunpack.c.l.b16 %v657
        %v1436 = vunpack.c.h.b16 %v657
        %v1437 = vunpack.c.l.b16 %v658
        %v1438 = vunpack.c.h.b16 %v658
        %v1439 = vunpack.c.l.b16 %v659
        %v1440 = vunpack.c.h.b16 %v659
        %v1441 = vunpack.c.l.b16 %v660
        %v1442 = vunpack.c.h.b16 %v660
        %v1443 = vunpack.c.l.b16 %v661
        %v1444 = vunpack.c.h.b16 %v661
        %v1445 = vunpack.c.l.b16 %v662
        %v1446 = vunpack.c.h.b16 %v662
        %v1447 = vunpack.c.l.b16 %v663
        %v1448 = vunpack.c.h.b16 %v663
        %v1449 = vunpack.c.l.b16 %v664
        %v1450 = vunpack.c.h.b16 %v664
        %v1451 = vunpack.c.l.b16 %v665
        %v1452 = vunpack.c.h.b16 %v665
        %v1453 = vunpack.c.l.b16 %v666
        %v1454 = vunpack.c.h.b16 %v666
        %v1455 = vunpack.c.l.b16 %v667
        %v1456 = vunpack.c.h.b16 %v667
        %v1457 = vunpack.c.l.b16 %v668
        %v1458 = vunpack.c.h.b16 %v668
        %v1459 = vunpack.c.l.b16 %v669
        %v1460 = vunpack.c.h.b16 %v669
        %v1461 = vunpack.c.l.b16 %v670
        %v1462 = vunpack.c.h.b16 %v670
        %v1463 = vunpack.c.l.b16 %v671
        %v1464 = vunpack.c.h.b16 %v671
        %v1465 = vunpack.c.l.b16 %v672
        %v1466 = vunpack.c.h.b16 %v672
        %v1467 = vunpack.c.l.b16 %v673
        %v1468 = vunpack.c.h.b16 %v673
        %v1469 = vunpack.c.l.b16 %v674
        %v1470 = vunpack.c.h.b16 %v674
        %v1471 = vpack.c.b16 %v963, %v959
        %v1472 = vpack.c.b16 %v964, %v960
        %v1473 = vpack.c.b16 %v965, %v961
        %v1474 = vpack.c.b16 %v966, %v962
        %v1475 = vpack.c.b16 %v971, %v967
        %v1476 = vpack.c.b16 %v972, %v968
        %v1477 = vpack.c.b16 %v973, %v969
        %v1478 = vpack.c.b16 %v974, %v970
        %v1479 = vpack.c.b16 %v979, %v975
        %v1480 = vpack.c.b16 %v980, %v976
        %v1481 = vpack.c.b16 %v981, %v977
        %v1482 = vpack.c.b16 %v982, %v978
        %v1483 = vpack.c.b16 %v987, %v983
        %v1484 = vpack.c.b16 %v988, %v984
        %v1485 = vpack.c.b16 %v989, %v985
        %v1486 = vpack.c.b16 %v990, %v986
        %v1487 = vpack.c.b16 %v995, %v991
        %v1488 = vpack.c.b16 %v996, %v992
        %v1489 = vpack.c.b16 %v997, %v993
        %v1490 = vpack.c.b16 %v998, %v994
        %v1491 = vpack.c.b16 %v1003, %v999
        %v1492 = vpack.c.b16 %v1004, %v1000
        %v1493 = vpack.c.b16 %v1005, %v1001
        %v1494 = vpack.c.b16 %v1006, %v1002
        %v1495 = vpack.c.b16 %v1011, %v1007
        %v1496 = vpack.c.b16 %v1012, %v1008
        %v1497 = vpack.c.b16 %v1013, %v1009
        %v1498 = vpack.c.b16 %v1014, %v1010
        %v1499 = vpack.c.b16 %v1019, %v1015
        %v1500 = vpack.c.b16 %v1020, %v1016
        %v1501 = vpack.c.b16 %v1021, %v1017
        %v1502 = vpack.c.b16 %v1022, %v1018
        %v1503 = vpack.c.b16 %v1027, %v1023
        %v1504 = vpack.c.b16 %v1028, %v1024
        %v1505 = vpack.c.b16 %v1029, %v1025
        %v1506 = vpack.c.b16 %v1030, %v1026
        %v1507 = vpack.c.b16 %v1035, %v1031
        %v1508 = vpack.c.b16 %v1036, %v1032
        %v1509 = vpack.c.b16 %v1037, %v1033
        %v1510 = vpack.c.b16 %v1038, %v1034
        %v1511 = vpack.c.b16 %v1043, %v1039
        %v1512 = vpack.c.b16 %v1044, %v1040
        %v1513 = vpack.c.b16 %v1045, %v1041
        %v1514 = vpack.c.b16 %v1046, %v1042
        %v1515 = vpack.c.b16 %v1051, %v1047
        %v1516 = vpack.c.b16 %v1052, %v1048
        %v1517 = vpack.c.b16 %v1053, %v1049
        %v1518 = vpack.c.b16 %v1054, %v1050
        %v1519 = vpack.c.b16 %v1059, %v1055
        %v1520 = vpack.c.b16 %v1060, %v1056
        %v1521 = vpack.c.b16 %v1061, %v1057
        %v1522 = vpack.c.b16 %v1062, %v1058
        %v1523 = vpack.c.b16 %v1067, %v1063
        %v1524 = vpack.c.b16 %v1068, %v1064
        %v1525 = vpack.c.b16 %v1069, %v1065
        %v1526 = vpack.c.b16 %v1070, %v1066
        %v1527 = vpack.c.b16 %v1075, %v1071
        %v1528 = vpack.c.b16 %v1076, %v1072
        %v1529 = vpack.c.b16 %v1077, %v1073
        %v1530 = vpack.c.b16 %v1078, %v1074
        %v1531 = vpack.c.b16 %v1083, %v1079
        %v1532 = vpack.c.b16 %v1084, %v1080
        %v1533 = vpack.c.b16 %v1085, %v1081
        %v1534 = vpack.c.b16 %v1086, %v1082
        %v1535 = vpack.c.b16 %v1091, %v1087
        %v1536 = vpack.c.b16 %v1092, %v1088
        %v1537 = vpack.c.b16 %v1093, %v1089
        %v1538 = vpack.c.b16 %v1094, %v1090
        %v1539 = vpack.c.b16 %v1099, %v1095
        %v1540 = vpack.c.b16 %v1100, %v1096
        %v1541 = vpack.c.b16 %v1101, %v1097
        %v1542 = vpack.c.b16 %v1102, %v1098
        %v1543 = vpack.c.b16 %v1107, %v1103
        %v1544 = vpack.c.b16 %v1108, %v1104
        %v1545 = vpack.c.b16 %v1109, %v1105
        %v1546 = vpack.c.b16 %v1110, %v1106
        %v1547 = vpack.c.b16 %v1115, %v1111
        %v1548 = vpack.c.b16 %v1116, %v1112
        %v1549 = vpack.c.b16 %v1117, %v1113
        %v1550 = vpack.c.b16 %v1118, %v1114
        %v1551 = vpack.c.b16 %v1123, %v1119
        %v1552 = vpack.c.b16 %v1124, %v1120
        %v1553 = vpack.c.b16 %v1125, %v1121
        %v1554 = vpack.c.b16 %v1126, %v1122
        %v1555 = vpack.c.b16 %v1131, %v1127
        %v1556 = vpack.c.b16 %v1132, %v1128
        %v1557 = vpack.c.b16 %v1133, %v1129
        %v1558 = vpack.c.b16 %v1134, %v1130
        %v1559 = vpack.c.b16 %v1139, %v1135
        %v1560 = vpack.c.b16 %v1140, %v1136
        %v1561 = vpack.c.b16 %v1141, %v1137
        %v1562 = vpack.c.b16 %v1142, %v1138
        %v1563 = vpack.c.b16 %v1147, %v1143
        %v1564 = vpack.c.b16 %v1148, %v1144
        %v1565 = vpack.c.b16 %v1149, %v1145
        %v1566 = vpack.c.b16 %v1150, %v1146
        %v1567 = vpack.c.b16 %v1155, %v1151
        %v1568 = vpack.c.b16 %v1156, %v1152
        %v1569 = vpack.c.b16 %v1157, %v1153
        %v1570 = vpack.c.b16 %v1158, %v1154
        %v1571 = vpack.c.b16 %v1163, %v1159
        %v1572 = vpack.c.b16 %v1164, %v1160
        %v1573 = vpack.c.b16 %v1165, %v1161
        %v1574 = vpack.c.b16 %v1166, %v1162
        %v1575 = vpack.c.b16 %v1171, %v1167
        %v1576 = vpack.c.b16 %v1172, %v1168
        %v1577 = vpack.c.b16 %v1173, %v1169
        %v1578 = vpack.c.b16 %v1174, %v1170
        %v1579 = vpack.c.b16 %v1179, %v1175
        %v1580 = vpack.c.b16 %v1180, %v1176
        %v1581 = vpack.c.b16 %v1181, %v1177
        %v1582 = vpack.c.b16 %v1182, %v1178
        %v1583 = vpack.c.b16 %v1187, %v1183
        %v1584 = vpack.c.b16 %v1188, %v1184
        %v1585 = vpack.c.b16 %v1189, %v1185
        %v1586 = vpack.c.b16 %v1190, %v1186
        %v1587 = vpack.c.b16 %v1195, %v1191
        %v1588 = vpack.c.b16 %v1196, %v1192
        %v1589 = vpack.c.b16 %v1197, %v1193
        %v1590 = vpack.c.b16 %v1198, %v1194
        %v1591 = vpack.c.b16 %v1203, %v1199
        %v1592 = vpack.c.b16 %v1204, %v1200
        %v1593 = vpack.c.b16 %v1205, %v1201
        %v1594 = vpack.c.b16 %v1206, %v1202
        %v1595 = vpack.c.b16 %v1211, %v1207
        %v1596 = vpack.c.b16 %v1212, %v1208
        %v1597 = vpack.c.b16 %v1213, %v1209
        %v1598 = vpack.c.b16 %v1214, %v1210
        %v1599 = vpack.c.b16 %v1219, %v1215
        %v1600 = vpack.c.b16 %v1220, %v1216
        %v1601 = vpack.c.b16 %v1221, %v1217
        %v1602 = vpack.c.b16 %v1222, %v1218
        %v1603 = vpack.c.b16 %v1227, %v1223
        %v1604 = vpack.c.b16 %v1228, %v1224
        %v1605 = vpack.c.b16 %v1229, %v1225
        %v1606 = vpack.c.b16 %v1230, %v1226
        %v1607 = vpack.c.b16 %v1235, %v1231
        %v1608 = vpack.c.b16 %v1236, %v1232
        %v1609 = vpack.c.b16 %v1237, %v1233
        %v1610 = vpack.c.b16 %v1238, %v1234
        %v1611 = vpack.c.b16 %v1243, %v1239
        %v1612 = vpack.c.b16 %v1244, %v1240
        %v1613 = vpack.c.b16 %v1245, %v1241
        %v1614 = vpack.c.b16 %v1246, %v1242
        %v1615 = vpack.c.b16 %v1251, %v1247
        %v1616 = vpack.c.b16 %v1252, %v1248
        %v1617 = vpack.c.b16 %v1253, %v1249
        %v1618 = vpack.c.b16 %v1254, %v1250
        %v1619 = vpack.c.b16 %v1259, %v1255
        %v1620 = vpack.c.b16 %v1260, %v1256
        %v1621 = vpack.c.b16 %v1261, %v1257
        %v1622 = vpack.c.b16 %v1262, %v1258
        %v1623 = vpack.c.b16 %v1267, %v1263
        %v1624 = vpack.c.b16 %v1268, %v1264
        %v1625 = vpack.c.b16 %v1269, %v1265
        %v1626 = vpack.c.b16 %v1270, %v1266
        %v1627 = vpack.c.b16 %v1275, %v1271
        %v1628 = vpack.c.b16 %v1276, %v1272
        %v1629 = vpack.c.b16 %v1277, %v1273
        %v1630 = vpack.c.b16 %v1278, %v1274
        %v1631 = vpack.c.b16 %v1283, %v1279
        %v1632 = vpack.c.b16 %v1284, %v1280
        %v1633 = vpack.c.b16 %v1285, %v1281
        %v1634 = vpack.c.b16 %v1286, %v1282
        %v1635 = vpack.c.b16 %v1291, %v1287
        %v1636 = vpack.c.b16 %v1292, %v1288
        %v1637 = vpack.c.b16 %v1293, %v1289
        %v1638 = vpack.c.b16 %v1294, %v1290
        %v1639 = vpack.c.b16 %v1299, %v1295
        %v1640 = vpack.c.b16 %v1300, %v1296
        %v1641 = vpack.c.b16 %v1301, %v1297
        %v1642 = vpack.c.b16 %v1302, %v1298
        %v1643 = vpack.c.b16 %v1307, %v1303
        %v1644 = vpack.c.b16 %v1308, %v1304
        %v1645 = vpack.c.b16 %v1309, %v1305
        %v1646 = vpack.c.b16 %v1310, %v1306
        %v1647 = vpack.c.b16 %v1315, %v1311
        %v1648 = vpack.c.b16 %v1316, %v1312
        %v1649 = vpack.c.b16 %v1317, %v1313
        %v1650 = vpack.c.b16 %v1318, %v1314
        %v1651 = vpack.c.b16 %v1323, %v1319
        %v1652 = vpack.c.b16 %v1324, %v1320
        %v1653 = vpack.c.b16 %v1325, %v1321
        %v1654 = vpack.c.b16 %v1326, %v1322
        %v1655 = vpack.c.b16 %v1331, %v1327
        %v1656 = vpack.c.b16 %v1332, %v1328
        %v1657 = vpack.c.b16 %v1333, %v1329
        %v1658 = vpack.c.b16 %v1334, %v1330
        %v1659 = vpack.c.b16 %v1339, %v1335
        %v1660 = vpack.c.b16 %v1340, %v1336
        %v1661 = vpack.c.b16 %v1341, %v1337
        %v1662 = vpack.c.b16 %v1342, %v1338
        %v1663 = vpack.c.b16 %v1347, %v1343
        %v1664 = vpack.c.b16 %v1348, %v1344
        %v1665 = vpack.c.b16 %v1349, %v1345
        %v1666 = vpack.c.b16 %v1350, %v1346
        %v1667 = vpack.c.b16 %v1355, %v1351
        %v1668 = vpack.c.b16 %v1356, %v1352
        %v1669 = vpack.c.b16 %v1357, %v1353
        %v1670 = vpack.c.b16 %v1358, %v1354
        %v1671 = vpack.c.b16 %v1363, %v1359
        %v1672 = vpack.c.b16 %v1364, %v1360
        %v1673 = vpack.c.b16 %v1365, %v1361
        %v1674 = vpack.c.b16 %v1366, %v1362
        %v1675 = vpack.c.b16 %v1371, %v1367
        %v1676 = vpack.c.b16 %v1372, %v1368
        %v1677 = vpack.c.b16 %v1373, %v1369
        %v1678 = vpack.c.b16 %v1374, %v1370
        %v1679 = vpack.c.b16 %v1379, %v1375
        %v1680 = vpack.c.b16 %v1380, %v1376
        %v1681 = vpack.c.b16 %v1381, %v1377
        %v1682 = vpack.c.b16 %v1382, %v1378
        %v1683 = vpack.c.b16 %v1387, %v1383
        %v1684 = vpack.c.b16 %v1388, %v1384
        %v1685 = vpack.c.b16 %v1389, %v1385
        %v1686 = vpack.c.b16 %v1390, %v1386
        %v1687 = vpack.c.b16 %v1395, %v1391
        %v1688 = vpack.c.b16 %v1396, %v1392
        %v1689 = vpack.c.b16 %v1397, %v1393
        %v1690 = vpack.c.b16 %v1398, %v1394
        %v1691 = vpack.c.b16 %v1403, %v1399
        %v1692 = vpack.c.b16 %v1404, %v1400
        %v1693 = vpack.c.b16 %v1405, %v1401
        %v1694 = vpack.c.b16 %v1406, %v1402
        %v1695 = vpack.c.b16 %v1411, %v1407
        %v1696 = vpack.c.b16 %v1412, %v1408
        %v1697 = vpack.c.b16 %v1413, %v1409
        %v1698 = vpack.c.b16 %v1414, %v1410
        %v1699 = vpack.c.b16 %v1419, %v1415
        %v1700 = vpack.c.b16 %v1420, %v1416
        %v1701 = vpack.c.b16 %v1421, %v1417
        %v1702 = vpack.c.b16 %v1422, %v1418
        %v1703 = vpack.c.b16 %v1427, %v1423
        %v1704 = vpack.c.b16 %v1428, %v1424
        %v1705 = vpack.c.b16 %v1429, %v1425
        %v1706 = vpack.c.b16 %v1430, %v1426
        %v1707 = vpack.c.b16 %v1435, %v1431
        %v1708 = vpack.c.b16 %v1436, %v1432
        %v1709 = vpack.c.b16 %v1437, %v1433
        %v1710 = vpack.c.b16 %v1438, %v1434
        %v1711 = vpack.c.b16 %v1443, %v1439
        %v1712 = vpack.c.b16 %v1444, %v1440
        %v1713 = vpack.c.b16 %v1445, %v1441
        %v1714 = vpack.c.b16 %v1446, %v1442
        %v1715 = vpack.c.b16 %v1451, %v1447
        %v1716 = vpack.c.b16 %v1452, %v1448
        %v1717 = vpack.c.b16 %v1453, %v1449
        %v1718 = vpack.c.b16 %v1454, %v1450
        %v1719 = vpack.c.b16 %v1459, %v1455
        %v1720 = vpack.c.b16 %v1460, %v1456
        %v1721 = vpack.c.b16 %v1461, %v1457
        %v1722 = vpack.c.b16 %v1462, %v1458
        %v1723 = vpack.c.b16 %v1467, %v1463
        %v1724 = vpack.c.b16 %v1468, %v1464
        %v1725 = vpack.c.b16 %v1469, %v1465
        %v1726 = vpack.c.b16 %v1470, %v1466
        %1983 = vmatprep.subr.bf16.mxu0 %v1472
        %1984 = vmatpush1.bf16.msra.mxu0 %v1471
        %1985 = vmatprep.subr.bf16.mxu0 %v1476
        %1986 = vmatpush1.bf16.msra.mxu0 %v1475
        %1987 = vmatprep.subr.bf16.mxu0 %v1480
        %1988 = vmatpush1.bf16.msra.mxu0 %v1479
        %1989 = vmatprep.subr.bf16.mxu0 %v1484
        %1990 = vmatpush1.bf16.msra.mxu0 %v1483
        %1991 = vmatprep.subr.bf16.mxu0 %v1488
        %1992 = vmatpush1.bf16.msra.mxu0 %v1487
        %1993 = vmatprep.subr.bf16.mxu0 %v1492
        %1994 = vmatpush1.bf16.msra.mxu0 %v1491
        %1995 = vmatprep.subr.bf16.mxu0 %v1496
        %1996 = vmatpush1.bf16.msra.mxu0 %v1495
        %1997 = vmatprep.subr.bf16.mxu0 %v1500
        %1998 = vmatpush1.bf16.msra.mxu0 %v1499
        %1999 = vmatprep.subr.bf16.mxu0 %v1504
        %2000 = vmatpush1.bf16.msra.mxu0 %v1503
        %2001 = vmatprep.subr.bf16.mxu0 %v1508
        %2002 = vmatpush1.bf16.msra.mxu0 %v1507
        %2003 = vmatprep.subr.bf16.mxu0 %v1512
        %2004 = vmatpush1.bf16.msra.mxu0 %v1511
        %2005 = vmatprep.subr.bf16.mxu0 %v1516
        %2006 = vmatpush1.bf16.msra.mxu0 %v1515
        %2007 = vmatprep.subr.bf16.mxu0 %v1520
        %2008 = vmatpush1.bf16.msra.mxu0 %v1519
        %2009 = vmatprep.subr.bf16.mxu0 %v1524
        %2010 = vmatpush1.bf16.msra.mxu0 %v1523
        %2011 = vmatprep.subr.bf16.mxu0 %v1528
        %2012 = vmatpush1.bf16.msra.mxu0 %v1527
        %2013 = vmatprep.subr.bf16.mxu0 %v1532
        %2014 = vmatpush1.bf16.msra.mxu0 %v1531
        %2015 = vmatprep.mubr.bf16.mxu0 %v688
        %2016 = vmatmul.mubr.bf16.gmra.mrb[0].mxu0 %v687
        %v2017 = vpop.f32.mrb[0].mxu0
        %v2018 = vadd.f32 0.0, %v2017
        %v2019 = vpop.f32.mrb[0].mxu0
        %v2020 = vadd.f32 0.0, %v2019
        %v2021 = vpop.f32.mrb[0].mxu0
        %v2022 = vpop.f32.mrb[0].mxu0
        %2023 = vdwg.mxu0
        %2024 = vmatprep.subr.bf16.mxu0 %v1536
        %2025 = vmatpush1.bf16.msra.mxu0 %v1535
        %2026 = vmatprep.subr.bf16.mxu0 %v1540
        %2027 = vmatpush1.bf16.msra.mxu0 %v1539
        %2028 = vmatprep.subr.bf16.mxu0 %v1544
        %2029 = vmatpush1.bf16.msra.mxu0 %v1543
        %2030 = vmatprep.subr.bf16.mxu0 %v1548
        %2031 = vmatpush1.bf16.msra.mxu0 %v1547
        %2032 = vmatprep.subr.bf16.mxu0 %v1552
        %2033 = vmatpush1.bf16.msra.mxu0 %v1551
        %2034 = vmatprep.subr.bf16.mxu0 %v1556
        %2035 = vmatpush1.bf16.msra.mxu0 %v1555
        %2036 = vmatprep.subr.bf16.mxu0 %v1560
        %2037 = vmatpush1.bf16.msra.mxu0 %v1559
        %2038 = vmatprep.subr.bf16.mxu0 %v1564
        %2039 = vmatpush1.bf16.msra.mxu0 %v1563
        %2040 = vmatprep.subr.bf16.mxu0 %v1568
        %2041 = vmatpush1.bf16.msra.mxu0 %v1567
        %2042 = vmatprep.subr.bf16.mxu0 %v1572
        %2043 = vmatpush1.bf16.msra.mxu0 %v1571
        %2044 = vmatprep.subr.bf16.mxu0 %v1576
        %2045 = vmatpush1.bf16.msra.mxu0 %v1575
        %2046 = vmatprep.subr.bf16.mxu0 %v1580
        %2047 = vmatpush1.bf16.msra.mxu0 %v1579
        %2048 = vmatprep.subr.bf16.mxu0 %v1584
        %2049 = vmatpush1.bf16.msra.mxu0 %v1583
        %2050 = vmatprep.subr.bf16.mxu0 %v1588
        %2051 = vmatpush1.bf16.msra.mxu0 %v1587
        %2052 = vmatprep.subr.bf16.mxu0 %v1592
        %2053 = vmatpush1.bf16.msra.mxu0 %v1591
        %2054 = vmatprep.subr.bf16.mxu0 %v1596
        %2055 = vmatpush1.bf16.msra.mxu0 %v1595
        %2056 = vmatprep.mubr.bf16.mxu0 %v690
        %2057 = vmatmul.mubr.bf16.gmra.mrb[0].mxu0 %v689
        %v2058 = vpop.f32.mrb[0].mxu0
        %v2059 = vadd.f32 %v2018, %v2058
        %v2060 = vpop.f32.mrb[0].mxu0
        %v2061 = vadd.f32 %v2020, %v2060
        %v2062 = vpop.f32.mrb[0].mxu0
        %v2063 = vpop.f32.mrb[0].mxu0
        %2064 = vdwg.mxu0
        %2065 = vmatprep.subr.bf16.mxu0 %v1600
        %2066 = vmatpush1.bf16.msra.mxu0 %v1599
        %2067 = vmatprep.subr.bf16.mxu0 %v1604
        %2068 = vmatpush1.bf16.msra.mxu0 %v1603
        %2069 = vmatprep.subr.bf16.mxu0 %v1608
        %2070 = vmatpush1.bf16.msra.mxu0 %v1607
        %2071 = vmatprep.subr.bf16.mxu0 %v1612
        %2072 = vmatpush1.bf16.msra.mxu0 %v1611
        %2073 = vmatprep.subr.bf16.mxu0 %v1616
        %2074 = vmatpush1.bf16.msra.mxu0 %v1615
        %2075 = vmatprep.subr.bf16.mxu0 %v1620
        %2076 = vmatpush1.bf16.msra.mxu0 %v1619
        %2077 = vmatprep.subr.bf16.mxu0 %v1624
        %2078 = vmatpush1.bf16.msra.mxu0 %v1623
        %2079 = vmatprep.subr.bf16.mxu0 %v1628
        %2080 = vmatpush1.bf16.msra.mxu0 %v1627
        %2081 = vmatprep.subr.bf16.mxu0 %v1632
        %2082 = vmatpush1.bf16.msra.mxu0 %v1631
        %2083 = vmatprep.subr.bf16.mxu0 %v1636
        %2084 = vmatpush1.bf16.msra.mxu0 %v1635
        %2085 = vmatprep.subr.bf16.mxu0 %v1640
        %2086 = vmatpush1.bf16.msra.mxu0 %v1639
        %2087 = vmatprep.subr.bf16.mxu0 %v1644
        %2088 = vmatpush1.bf16.msra.mxu0 %v1643
        %2089 = vmatprep.subr.bf16.mxu0 %v1648
        %2090 = vmatpush1.bf16.msra.mxu0 %v1647
        %2091 = vmatprep.subr.bf16.mxu0 %v1652
        %2092 = vmatpush1.bf16.msra.mxu0 %v1651
        %2093 = vmatprep.subr.bf16.mxu0 %v1656
        %2094 = vmatpush1.bf16.msra.mxu0 %v1655
        %2095 = vmatprep.subr.bf16.mxu0 %v1660
        %2096 = vmatpush1.bf16.msra.mxu0 %v1659
        %2097 = vmatprep.mubr.bf16.mxu0 %v692
        %2098 = vmatmul.mubr.bf16.gmra.mrb[0].mxu0 %v691
        %v2099 = vpop.f32.mrb[0].mxu0
        %v2100 = vadd.f32 %v2059, %v2099
        %v2101 = vpop.f32.mrb[0].mxu0
        %v2102 = vadd.f32 %v2061, %v2101
        %v2103 = vpop.f32.mrb[0].mxu0
        %v2104 = vpop.f32.mrb[0].mxu0
        %2105 = vdwg.mxu0
        %2106 = vmatprep.subr.bf16.mxu0 %v1664
        %2107 = vmatpush1.bf16.msra.mxu0 %v1663
        %2108 = vmatprep.subr.bf16.mxu0 %v1668
        %2109 = vmatpush1.bf16.msra.mxu0 %v1667
        %2110 = vmatprep.subr.bf16.mxu0 %v1672
        %2111 = vmatpush1.bf16.msra.mxu0 %v1671
        %2112 = vmatprep.subr.bf16.mxu0 %v1676
        %2113 = vmatpush1.bf16.msra.mxu0 %v1675
        %2114 = vmatprep.subr.bf16.mxu0 %v1680
        %2115 = vmatpush1.bf16.msra.mxu0 %v1679
        %2116 = vmatprep.subr.bf16.mxu0 %v1684
        %2117 = vmatpush1.bf16.msra.mxu0 %v1683
        %2118 = vmatprep.subr.bf16.mxu0 %v1688
        %2119 = vmatpush1.bf16.msra.mxu0 %v1687
        %2120 = vmatprep.subr.bf16.mxu0 %v1692
        %2121 = vmatpush1.bf16.msra.mxu0 %v1691
        %2122 = vmatprep.subr.bf16.mxu0 %v1696
        %2123 = vmatpush1.bf16.msra.mxu0 %v1695
        %2124 = vmatprep.subr.bf16.mxu0 %v1700
        %2125 = vmatpush1.bf16.msra.mxu0 %v1699
        %2126 = vmatprep.subr.bf16.mxu0 %v1704
        %2127 = vmatpush1.bf16.msra.mxu0 %v1703
        %2128 = vmatprep.subr.bf16.mxu0 %v1708
        %2129 = vmatpush1.bf16.msra.mxu0 %v1707
        %2130 = vmatprep.subr.bf16.mxu0 %v1712
        %2131 = vmatpush1.bf16.msra.mxu0 %v1711
        %2132 = vmatprep.subr.bf16.mxu0 %v1716
        %2133 = vmatpush1.bf16.msra.mxu0 %v1715
        %2134 = vmatprep.subr.bf16.mxu0 %v1720
        %2135 = vmatpush1.bf16.msra.mxu0 %v1719
        %2136 = vmatprep.subr.bf16.mxu0 %v1724
        %2137 = vmatpush1.bf16.msra.mxu0 %v1723
        %2138 = vmatprep.mubr.bf16.mxu0 %v694
        %2139 = vmatmul.mubr.bf16.gmra.mrb[0].mxu0 %v693
        %v2140 = vpop.f32.mrb[0].mxu0
        %v2141 = vadd.f32 %v2100, %v2140
        %v2142 = vpop.f32.mrb[0].mxu0
        %v2143 = vadd.f32 %v2102, %v2142
        %v2144 = vpop.f32.mrb[0].mxu0
        %v2145 = vpop.f32.mrb[0].mxu0
        %2146 = vdwg.mxu0
        %2147 = vmatprep.subr.bf16.mxu0 %v1474
        %2148 = vmatpush1.bf16.msra.mxu0 %v1473
        %2149 = vmatprep.subr.bf16.mxu0 %v1478
        %2150 = vmatpush1.bf16.msra.mxu0 %v1477
        %2151 = vmatprep.subr.bf16.mxu0 %v1482
        %2152 = vmatpush1.bf16.msra.mxu0 %v1481
        %2153 = vmatprep.subr.bf16.mxu0 %v1486
        %2154 = vmatpush1.bf16.msra.mxu0 %v1485
        %2155 = vmatprep.subr.bf16.mxu0 %v1490
        %2156 = vmatpush1.bf16.msra.mxu0 %v1489
        %2157 = vmatprep.subr.bf16.mxu0 %v1494
        %2158 = vmatpush1.bf16.msra.mxu0 %v1493
        %2159 = vmatprep.subr.bf16.mxu0 %v1498
        %2160 = vmatpush1.bf16.msra.mxu0 %v1497
        %2161 = vmatprep.subr.bf16.mxu0 %v1502
        %2162 = vmatpush1.bf16.msra.mxu0 %v1501
        %2163 = vmatprep.subr.bf16.mxu0 %v1506
        %2164 = vmatpush1.bf16.msra.mxu0 %v1505
        %2165 = vmatprep.subr.bf16.mxu0 %v1510
        %2166 = vmatpush1.bf16.msra.mxu0 %v1509
        %2167 = vmatprep.subr.bf16.mxu0 %v1514
        %2168 = vmatpush1.bf16.msra.mxu0 %v1513
        %2169 = vmatprep.subr.bf16.mxu0 %v1518
        %2170 = vmatpush1.bf16.msra.mxu0 %v1517
        %2171 = vmatprep.subr.bf16.mxu0 %v1522
        %2172 = vmatpush1.bf16.msra.mxu0 %v1521
        %2173 = vmatprep.subr.bf16.mxu0 %v1526
        %2174 = vmatpush1.bf16.msra.mxu0 %v1525
        %2175 = vmatprep.subr.bf16.mxu0 %v1530
        %2176 = vmatpush1.bf16.msra.mxu0 %v1529
        %2177 = vmatprep.subr.bf16.mxu0 %v1534
        %2178 = vmatpush1.bf16.msra.mxu0 %v1533
        %2179 = vmatprep.mubr.bf16.mxu0 %v688
        %2180 = vmatmul.mubr.bf16.gmra.mrb[0].mxu0 %v687
        %v2181 = vpop.f32.mrb[0].mxu0
        %v2182 = vadd.f32 0.0, %v2181
        %v2183 = vpop.f32.mrb[0].mxu0
        %v2184 = vadd.f32 0.0, %v2183
        %v2185 = vpop.f32.mrb[0].mxu0
        %v2186 = vpop.f32.mrb[0].mxu0
        %2187 = vdwg.mxu0
        %2188 = vmatprep.subr.bf16.mxu0 %v1538
        %2189 = vmatpush1.bf16.msra.mxu0 %v1537
        %2190 = vmatprep.subr.bf16.mxu0 %v1542
        %2191 = vmatpush1.bf16.msra.mxu0 %v1541
        %2192 = vmatprep.subr.bf16.mxu0 %v1546
        %2193 = vmatpush1.bf16.msra.mxu0 %v1545
        %2194 = vmatprep.subr.bf16.mxu0 %v1550
        %2195 = vmatpush1.bf16.msra.mxu0 %v1549
        %2196 = vmatprep.subr.bf16.mxu0 %v1554
        %2197 = vmatpush1.bf16.msra.mxu0 %v1553
        %2198 = vmatprep.subr.bf16.mxu0 %v1558
        %2199 = vmatpush1.bf16.msra.mxu0 %v1557
        %2200 = vmatprep.subr.bf16.mxu0 %v1562
        %2201 = vmatpush1.bf16.msra.mxu0 %v1561
        %2202 = vmatprep.subr.bf16.mxu0 %v1566
        %2203 = vmatpush1.bf16.msra.mxu0 %v1565
        %2204 = vmatprep.subr.bf16.mxu0 %v1570
        %2205 = vmatpush1.bf16.msra.mxu0 %v1569
        %2206 = vmatprep.subr.bf16.mxu0 %v1574
        %2207 = vmatpush1.bf16.msra.mxu0 %v1573
        %2208 = vmatprep.subr.bf16.mxu0 %v1578
        %2209 = vmatpush1.bf16.msra.mxu0 %v1577
        %2210 = vmatprep.subr.bf16.mxu0 %v1582
        %2211 = vmatpush1.bf16.msra.mxu0 %v1581
        %2212 = vmatprep.subr.bf16.mxu0 %v1586
        %2213 = vmatpush1.bf16.msra.mxu0 %v1585
        %2214 = vmatprep.subr.bf16.mxu0 %v1590
        %2215 = vmatpush1.bf16.msra.mxu0 %v1589
        %2216 = vmatprep.subr.bf16.mxu0 %v1594
        %2217 = vmatpush1.bf16.msra.mxu0 %v1593
        %2218 = vmatprep.subr.bf16.mxu0 %v1598
        %2219 = vmatpush1.bf16.msra.mxu0 %v1597
        %2220 = vmatprep.mubr.bf16.mxu0 %v690
        %2221 = vmatmul.mubr.bf16.gmra.mrb[0].mxu0 %v689
        %v2222 = vpop.f32.mrb[0].mxu0
        %v2223 = vadd.f32 %v2182, %v2222
        %v2224 = vpop.f32.mrb[0].mxu0
        %v2225 = vadd.f32 %v2184, %v2224
        %v2226 = vpop.f32.mrb[0].mxu0
        %v2227 = vpop.f32.mrb[0].mxu0
        %2228 = vdwg.mxu0
        %2229 = vmatprep.subr.bf16.mxu0 %v1602
        %2230 = vmatpush1.bf16.msra.mxu0 %v1601
        %2231 = vmatprep.subr.bf16.mxu0 %v1606
        %2232 = vmatpush1.bf16.msra.mxu0 %v1605
        %2233 = vmatprep.subr.bf16.mxu0 %v1610
        %2234 = vmatpush1.bf16.msra.mxu0 %v1609
        %2235 = vmatprep.subr.bf16.mxu0 %v1614
        %2236 = vmatpush1.bf16.msra.mxu0 %v1613
        %2237 = vmatprep.subr.bf16.mxu0 %v1618
        %2238 = vmatpush1.bf16.msra.mxu0 %v1617
        %2239 = vmatprep.subr.bf16.mxu0 %v1622
        %2240 = vmatpush1.bf16.msra.mxu0 %v1621
        %2241 = vmatprep.subr.bf16.mxu0 %v1626
        %2242 = vmatpush1.bf16.msra.mxu0 %v1625
        %2243 = vmatprep.subr.bf16.mxu0 %v1630
        %2244 = vmatpush1.bf16.msra.mxu0 %v1629
        %2245 = vmatprep.subr.bf16.mxu0 %v1634
        %2246 = vmatpush1.bf16.msra.mxu0 %v1633
        %2247 = vmatprep.subr.bf16.mxu0 %v1638
        %2248 = vmatpush1.bf16.msra.mxu0 %v1637
        %2249 = vmatprep.subr.bf16.mxu0 %v1642
        %2250 = vmatpush1.bf16.msra.mxu0 %v1641
        %2251 = vmatprep.subr.bf16.mxu0 %v1646
        %2252 = vmatpush1.bf16.msra.mxu0 %v1645
        %2253 = vmatprep.subr.bf16.mxu0 %v1650
        %2254 = vmatpush1.bf16.msra.mxu0 %v1649
        %2255 = vmatprep.subr.bf16.mxu0 %v1654
        %2256 = vmatpush1.bf16.msra.mxu0 %v1653
        %2257 = vmatprep.subr.bf16.mxu0 %v1658
        %2258 = vmatpush1.bf16.msra.mxu0 %v1657
        %2259 = vmatprep.subr.bf16.mxu0 %v1662
        %2260 = vmatpush1.bf16.msra.mxu0 %v1661
        %2261 = vmatprep.mubr.bf16.mxu0 %v692
        %2262 = vmatmul.mubr.bf16.gmra.mrb[0].mxu0 %v691
        %v2263 = vpop.f32.mrb[0].mxu0
        %v2264 = vadd.f32 %v2223, %v2263
        %v2265 = vpop.f32.mrb[0].mxu0
        %v2266 = vadd.f32 %v2225, %v2265
        %v2267 = vpop.f32.mrb[0].mxu0
        %v2268 = vpop.f32.mrb[0].mxu0
        %2269 = vdwg.mxu0
        %2270 = vmatprep.subr.bf16.mxu0 %v1666
        %2271 = vmatpush1.bf16.msra.mxu0 %v1665
        %2272 = vmatprep.subr.bf16.mxu0 %v1670
        %2273 = vmatpush1.bf16.msra.mxu0 %v1669
        %2274 = vmatprep.subr.bf16.mxu0 %v1674
        %2275 = vmatpush1.bf16.msra.mxu0 %v1673
        %2276 = vmatprep.subr.bf16.mxu0 %v1678
        %2277 = vmatpush1.bf16.msra.mxu0 %v1677
        %2278 = vmatprep.subr.bf16.mxu0 %v1682
        %2279 = vmatpush1.bf16.msra.mxu0 %v1681
        %2280 = vmatprep.subr.bf16.mxu0 %v1686
        %2281 = vmatpush1.bf16.msra.mxu0 %v1685
        %2282 = vmatprep.subr.bf16.mxu0 %v1690
        %2283 = vmatpush1.bf16.msra.mxu0 %v1689
        %2284 = vmatprep.subr.bf16.mxu0 %v1694
        %2285 = vmatpush1.bf16.msra.mxu0 %v1693
        %2286 = vmatprep.subr.bf16.mxu0 %v1698
        %2287 = vmatpush1.bf16.msra.mxu0 %v1697
        %2288 = vmatprep.subr.bf16.mxu0 %v1702
        %2289 = vmatpush1.bf16.msra.mxu0 %v1701
        %2290 = vmatprep.subr.bf16.mxu0 %v1706
        %2291 = vmatpush1.bf16.msra.mxu0 %v1705
        %2292 = vmatprep.subr.bf16.mxu0 %v1710
        %2293 = vmatpush1.bf16.msra.mxu0 %v1709
        %2294 = vmatprep.subr.bf16.mxu0 %v1714
        %2295 = vmatpush1.bf16.msra.mxu0 %v1713
        %2296 = vmatprep.subr.bf16.mxu0 %v1718
        %2297 = vmatpush1.bf16.msra.mxu0 %v1717
        %2298 = vmatprep.subr.bf16.mxu0 %v1722
        %2299 = vmatpush1.bf16.msra.mxu0 %v1721
        %2300 = vmatprep.subr.bf16.mxu0 %v1726
        %2301 = vmatpush1.bf16.msra.mxu0 %v1725
        %2302 = vmatprep.mubr.bf16.mxu0 %v694
        %2303 = vmatmul.mubr.bf16.gmra.mrb[0].mxu0 %v693
        %v2304 = vpop.f32.mrb[0].mxu0
        %v2305 = vadd.f32 %v2264, %v2304
        %v2306 = vpop.f32.mrb[0].mxu0
        %v2307 = vadd.f32 %v2266, %v2306
        %v2308 = vpop.f32.mrb[0].mxu0
        %v2309 = vpop.f32.mrb[0].mxu0
        %2310 = vdwg.mxu0
        %p2311 = scmp.eq.s32.totalorder %s29, 0
        // Predicated region
        $region73: #{discriminator_forward.1} parent=47 // pred_check
          %p2312 = pneg %p2311
        $region74: #{discriminator_forward.1} parent=47 // pred_check_branch
          %2314 = sbr.rel (%p2312) target = $region76
        $region75: #{discriminator_forward.1} parent=47 // pred_region
          %2315 = vst [vmem:[#allocation2] sm:$0xff] %v2141
          %2316 = vst [vmem:[#allocation2 + $0x8] sm:$0xff] %v2143
          %2317 = vst [vmem:[#allocation2 + $0x10] sm:$0xff] %v2305
          %2318 = vst [vmem:[#allocation2 + $0x18] sm:$0xff] %v2307
        $region76: #{discriminator_forward.1} parent=47 // pred_fallthru
          _
        %p2319 = scmp.gt.s32.totalorder %s29, 0
        // Predicated region
        $region77: #{discriminator_forward.1} parent=47 // pred_check
          %p2320 = pneg %p2319
        $region78: #{discriminator_forward.1} parent=47 // pred_check_branch
          %2322 = sbr.rel (%p2320) target = $region80
        $region79: #{discriminator_forward.1} parent=47 // pred_region
          %v2323 = vld [vmem:[#allocation2] sm:$0xff]
          %v2324 = vld [vmem:[#allocation2 + $0x8] sm:$0xff]
          %v2325 = vld [vmem:[#allocation2 + $0x10] sm:$0xff]
          %v2326 = vld [vmem:[#allocation2 + $0x18] sm:$0xff]
          %v2327 = vadd.f32 %v2323, %v2141
          %v2328 = vadd.f32 %v2324, %v2143
          %v2329 = vadd.f32 %v2325, %v2305
          %v2330 = vadd.f32 %v2326, %v2307
          %2331 = vst [vmem:[#allocation2] sm:$0xff] %v2327
          %2332 = vst [vmem:[#allocation2 + $0x8] sm:$0xff] %v2328
          %2333 = vst [vmem:[#allocation2 + $0x10] sm:$0xff] %v2329
          %2334 = vst [vmem:[#allocation2 + $0x18] sm:$0xff] %v2330
        $region80: #{discriminator_forward.1} parent=47 // pred_fallthru
          _
        %p2335 = scmp.eq.s32.totalorder %s29, 1
        // Predicated region
        $region81: #{discriminator_forward.1} parent=47 // pred_check
          %p2336 = pneg %p2335
        $region82: #{discriminator_forward.1} parent=47 // pred_check_branch
          %2338 = sbr.rel (%p2336) target = $region84
        $region83: #{discriminator_forward.1} parent=47 // pred_region
          %v2339 = vld [vmem:[#allocation2] sm:$0xff]
          %v2340 = vld [vmem:[#allocation2 + $0x8] sm:$0xff]
          %v2341 = vld [vmem:[#allocation2 + $0x10] sm:$0xff]
          %v2342 = vld [vmem:[#allocation2 + $0x18] sm:$0xff]
          %v2343 = vld [vmem:[#allocation5] sm:$0xf]
          %v2345 = vlaneseq
          %v2346 = vshrl.u32 %v2345, 7
          %v2347 = vsub.s32 0, %v2346
          %v2348 = vrot.slane %v2343, %v2347
          %v2349 = vlaneseq
          %v2350 = vshrl.u32 %v2349, 7
          %v2351 = vsub.s32 1, %v2350
          %v2352 = vrot.slane %v2343, %v2351
          %v2353 = vlaneseq
          %v2354 = vshrl.u32 %v2353, 7
          %v2355 = vsub.s32 2, %v2354
          %v2356 = vrot.slane %v2343, %v2355
          %v2357 = vlaneseq
          %v2358 = vshrl.u32 %v2357, 7
          %v2359 = vsub.s32 3, %v2358
          %v2360 = vrot.slane %v2343, %v2359
          %v2365 = vadd.f32 %v2339, %v2348
          %v2366 = vadd.f32 %v2340, %v2352
          %v2367 = vadd.f32 %v2341, %v2356
          %v2368 = vadd.f32 %v2342, %v2360
          %vm2369 = vcmp.gt.f32.partialorder %v2365, 0.0
          %vm2370 = vcmp.gt.f32.partialorder %v2366, 0.0
          %vm2371 = vcmp.gt.f32.partialorder %v2367, 0.0
          %vm2372 = vcmp.gt.f32.partialorder %v2368, 0.0
          %v2373 = vmul.f32 %v2365, 0.2
          %v2374 = vmul.f32 %v2366, 0.2
          %v2375 = vmul.f32 %v2367, 0.2
          %v2376 = vmul.f32 %v2368, 0.2
          %v2377 = vsel %vm2369, %v2365, %v2373
          %v2378 = vsel %vm2370, %v2366, %v2374
          %v2379 = vsel %vm2371, %v2367, %v2375
          %v2380 = vsel %vm2372, %v2368, %v2376
          %2381 = vst [vmem:[#allocation2] sm:$0xff] %v2377
          %2382 = vst [vmem:[#allocation2 + $0x8] sm:$0xff] %v2378
          %2383 = vst [vmem:[#allocation2 + $0x10] sm:$0xff] %v2379
          %2384 = vst [vmem:[#allocation2 + $0x18] sm:$0xff] %v2380
          %v2385 = vld [vmem:[#allocation2] sm:$0xff]
          %v2386 = vld [vmem:[#allocation2 + $0x8] sm:$0xff]
          %v2387 = vld [vmem:[#allocation2 + $0x10] sm:$0xff]
          %v2388 = vld [vmem:[#allocation2 + $0x18] sm:$0xff]
          %v2389 = vpack.c.bf16 %v2385, %v2385
          %v2390 = vpack.c.bf16 %v2386, %v2386
          %v2391 = vpack.c.bf16 %v2387, %v2387
          %v2392 = vpack.c.bf16 %v2388, %v2388
          %v2393 = vld [vmem:[#allocation7] sm:$0xff]
          %v2394 = vld [vmem:[#allocation7 + $0x8] sm:$0xff]
          %v2395 = vld [vmem:[#allocation7 + $0x10] sm:$0xff]
          %v2396 = vld [vmem:[#allocation7 + $0x18] sm:$0xff]
          %v2397 = vld [vmem:[#allocation7 + $0x20] sm:$0xff]
          %v2398 = vld [vmem:[#allocation7 + $0x28] sm:$0xff]
          %v2399 = vld [vmem:[#allocation7 + $0x30] sm:$0xff]
          %v2400 = vld [vmem:[#allocation7 + $0x38] sm:$0xff]
          %v2401 = vld [vmem:[#allocation7 + $0x40] sm:$0xff]
          %v2402 = vld [vmem:[#allocation7 + $0x48] sm:$0xff]
          %v2403 = vld [vmem:[#allocation7 + $0x50] sm:$0xff]
          %v2404 = vld [vmem:[#allocation7 + $0x58] sm:$0xff]
          %v2405 = vld [vmem:[#allocation7 + $0x60] sm:$0xff]
          %v2406 = vld [vmem:[#allocation7 + $0x68] sm:$0xff]
          %v2407 = vld [vmem:[#allocation7 + $0x70] sm:$0xff]
          %v2408 = vld [vmem:[#allocation7 + $0x78] sm:$0xff]
          %v2409 = vld [vmem:[#allocation7 + $0x80] sm:$0xff]
          %v2410 = vld [vmem:[#allocation7 + $0x88] sm:$0xff]
          %v2411 = vld [vmem:[#allocation7 + $0x90] sm:$0xff]
          %v2412 = vld [vmem:[#allocation7 + $0x98] sm:$0xff]
          %v2413 = vld [vmem:[#allocation7 + $0xa0] sm:$0xff]
          %v2414 = vld [vmem:[#allocation7 + $0xa8] sm:$0xff]
          %v2415 = vld [vmem:[#allocation7 + $0xb0] sm:$0xff]
          %v2416 = vld [vmem:[#allocation7 + $0xb8] sm:$0xff]
          %v2417 = vld [vmem:[#allocation7 + $0xc0] sm:$0xff]
          %v2418 = vld [vmem:[#allocation7 + $0xc8] sm:$0xff]
          %v2419 = vld [vmem:[#allocation7 + $0xd0] sm:$0xff]
          %v2420 = vld [vmem:[#allocation7 + $0xd8] sm:$0xff]
          %v2421 = vld [vmem:[#allocation7 + $0xe0] sm:$0xff]
          %v2422 = vld [vmem:[#allocation7 + $0xe8] sm:$0xff]
          %v2423 = vld [vmem:[#allocation7 + $0xf0] sm:$0xff]
          %v2424 = vld [vmem:[#allocation7 + $0xf8] sm:$0xff]
          %v2425 = vld [vmem:[#allocation7 + $0x100] sm:$0xff]
          %v2426 = vld [vmem:[#allocation7 + $0x108] sm:$0xff]
          %v2427 = vld [vmem:[#allocation7 + $0x110] sm:$0xff]
          %v2428 = vld [vmem:[#allocation7 + $0x118] sm:$0xff]
          %v2429 = vld [vmem:[#allocation7 + $0x120] sm:$0xff]
          %v2430 = vld [vmem:[#allocation7 + $0x128] sm:$0xff]
          %v2431 = vld [vmem:[#allocation7 + $0x130] sm:$0xff]
          %v2432 = vld [vmem:[#allocation7 + $0x138] sm:$0xff]
          %v2433 = vld [vmem:[#allocation7 + $0x140] sm:$0xff]
          %v2434 = vld [vmem:[#allocation7 + $0x148] sm:$0xff]
          %v2435 = vld [vmem:[#allocation7 + $0x150] sm:$0xff]
          %v2436 = vld [vmem:[#allocation7 + $0x158] sm:$0xff]
          %v2437 = vld [vmem:[#allocation7 + $0x160] sm:$0xff]
          %v2438 = vld [vmem:[#allocation7 + $0x168] sm:$0xff]
          %v2439 = vld [vmem:[#allocation7 + $0x170] sm:$0xff]
          %v2440 = vld [vmem:[#allocation7 + $0x178] sm:$0xff]
          %v2441 = vld [vmem:[#allocation7 + $0x180] sm:$0xff]
          %v2442 = vld [vmem:[#allocation7 + $0x188] sm:$0xff]
          %v2443 = vld [vmem:[#allocation7 + $0x190] sm:$0xff]
          %v2444 = vld [vmem:[#allocation7 + $0x198] sm:$0xff]
          %v2445 = vld [vmem:[#allocation7 + $0x1a0] sm:$0xff]
          %v2446 = vld [vmem:[#allocation7 + $0x1a8] sm:$0xff]
          %v2447 = vld [vmem:[#allocation7 + $0x1b0] sm:$0xff]
          %v2448 = vld [vmem:[#allocation7 + $0x1b8] sm:$0xff]
          %v2449 = vld [vmem:[#allocation7 + $0x1c0] sm:$0xff]
          %v2450 = vld [vmem:[#allocation7 + $0x1c8] sm:$0xff]
          %v2451 = vld [vmem:[#allocation7 + $0x1d0] sm:$0xff]
          %v2452 = vld [vmem:[#allocation7 + $0x1d8] sm:$0xff]
          %v2453 = vld [vmem:[#allocation7 + $0x1e0] sm:$0xff]
          %v2454 = vld [vmem:[#allocation7 + $0x1e8] sm:$0xff]
          %v2455 = vld [vmem:[#allocation7 + $0x1f0] sm:$0xff]
          %v2456 = vld [vmem:[#allocation7 + $0x1f8] sm:$0xff]
          %v2457 = vld [vmem:[#allocation8] sm:$0x3]
          %v2459 = vlaneseq
          %v2460 = vshrl.u32 %v2459, 7
          %v2461 = vsub.s32 0, %v2460
          %v2462 = vrot.slane %v2457, %v2461
          %v2463 = vlaneseq
          %v2464 = vshrl.u32 %v2463, 7
          %v2465 = vsub.s32 1, %v2464
          %v2466 = vrot.slane %v2457, %v2465
          %v2533 = vunpack.c.l.b16 %v2393
          %v2534 = vunpack.c.h.b16 %v2393
          %v2535 = vunpack.c.l.b16 %v2394
          %v2536 = vunpack.c.h.b16 %v2394
          %v2537 = vunpack.c.l.b16 %v2395
          %v2538 = vunpack.c.h.b16 %v2395
          %v2539 = vunpack.c.l.b16 %v2396
          %v2540 = vunpack.c.h.b16 %v2396
          %v2541 = vunpack.c.l.b16 %v2397
          %v2542 = vunpack.c.h.b16 %v2397
          %v2543 = vunpack.c.l.b16 %v2398
          %v2544 = vunpack.c.h.b16 %v2398
          %v2545 = vunpack.c.l.b16 %v2399
          %v2546 = vunpack.c.h.b16 %v2399
          %v2547 = vunpack.c.l.b16 %v2400
          %v2548 = vunpack.c.h.b16 %v2400
          %v2549 = vunpack.c.l.b16 %v2401
          %v2550 = vunpack.c.h.b16 %v2401
          %v2551 = vunpack.c.l.b16 %v2402
          %v2552 = vunpack.c.h.b16 %v2402
          %v2553 = vunpack.c.l.b16 %v2403
          %v2554 = vunpack.c.h.b16 %v2403
          %v2555 = vunpack.c.l.b16 %v2404
          %v2556 = vunpack.c.h.b16 %v2404
          %v2557 = vunpack.c.l.b16 %v2405
          %v2558 = vunpack.c.h.b16 %v2405
          %v2559 = vunpack.c.l.b16 %v2406
          %v2560 = vunpack.c.h.b16 %v2406
          %v2561 = vunpack.c.l.b16 %v2407
          %v2562 = vunpack.c.h.b16 %v2407
          %v2563 = vunpack.c.l.b16 %v2408
          %v2564 = vunpack.c.h.b16 %v2408
          %v2565 = vunpack.c.l.b16 %v2409
          %v2566 = vunpack.c.h.b16 %v2409
          %v2567 = vunpack.c.l.b16 %v2410
          %v2568 = vunpack.c.h.b16 %v2410
          %v2569 = vunpack.c.l.b16 %v2411
          %v2570 = vunpack.c.h.b16 %v2411
          %v2571 = vunpack.c.l.b16 %v2412
          %v2572 = vunpack.c.h.b16 %v2412
          %v2573 = vunpack.c.l.b16 %v2413
          %v2574 = vunpack.c.h.b16 %v2413
          %v2575 = vunpack.c.l.b16 %v2414
          %v2576 = vunpack.c.h.b16 %v2414
          %v2577 = vunpack.c.l.b16 %v2415
          %v2578 = vunpack.c.h.b16 %v2415
          %v2579 = vunpack.c.l.b16 %v2416
          %v2580 = vunpack.c.h.b16 %v2416
          %v2581 = vunpack.c.l.b16 %v2417
          %v2582 = vunpack.c.h.b16 %v2417
          %v2583 = vunpack.c.l.b16 %v2418
          %v2584 = vunpack.c.h.b16 %v2418
          %v2585 = vunpack.c.l.b16 %v2419
          %v2586 = vunpack.c.h.b16 %v2419
          %v2587 = vunpack.c.l.b16 %v2420
          %v2588 = vunpack.c.h.b16 %v2420
          %v2589 = vunpack.c.l.b16 %v2421
          %v2590 = vunpack.c.h.b16 %v2421
          %v2591 = vunpack.c.l.b16 %v2422
          %v2592 = vunpack.c.h.b16 %v2422
          %v2593 = vunpack.c.l.b16 %v2423
          %v2594 = vunpack.c.h.b16 %v2423
          %v2595 = vunpack.c.l.b16 %v2424
          %v2596 = vunpack.c.h.b16 %v2424
          %v2597 = vunpack.c.l.b16 %v2425
          %v2598 = vunpack.c.h.b16 %v2425
          %v2599 = vunpack.c.l.b16 %v2426
          %v2600 = vunpack.c.h.b16 %v2426
          %v2601 = vunpack.c.l.b16 %v2427
          %v2602 = vunpack.c.h.b16 %v2427
          %v2603 = vunpack.c.l.b16 %v2428
          %v2604 = vunpack.c.h.b16 %v2428
          %v2605 = vunpack.c.l.b16 %v2429
          %v2606 = vunpack.c.h.b16 %v2429
          %v2607 = vunpack.c.l.b16 %v2430
          %v2608 = vunpack.c.h.b16 %v2430
          %v2609 = vunpack.c.l.b16 %v2431
          %v2610 = vunpack.c.h.b16 %v2431
          %v2611 = vunpack.c.l.b16 %v2432
          %v2612 = vunpack.c.h.b16 %v2432
          %v2613 = vunpack.c.l.b16 %v2433
          %v2614 = vunpack.c.h.b16 %v2433
          %v2615 = vunpack.c.l.b16 %v2434
          %v2616 = vunpack.c.h.b16 %v2434
          %v2617 = vunpack.c.l.b16 %v2435
          %v2618 = vunpack.c.h.b16 %v2435
          %v2619 = vunpack.c.l.b16 %v2436
          %v2620 = vunpack.c.h.b16 %v2436
          %v2621 = vunpack.c.l.b16 %v2437
          %v2622 = vunpack.c.h.b16 %v2437
          %v2623 = vunpack.c.l.b16 %v2438
          %v2624 = vunpack.c.h.b16 %v2438
          %v2625 = vunpack.c.l.b16 %v2439
          %v2626 = vunpack.c.h.b16 %v2439
          %v2627 = vunpack.c.l.b16 %v2440
          %v2628 = vunpack.c.h.b16 %v2440
          %v2629 = vunpack.c.l.b16 %v2441
          %v2630 = vunpack.c.h.b16 %v2441
          %v2631 = vunpack.c.l.b16 %v2442
          %v2632 = vunpack.c.h.b16 %v2442
          %v2633 = vunpack.c.l.b16 %v2443
          %v2634 = vunpack.c.h.b16 %v2443
          %v2635 = vunpack.c.l.b16 %v2444
          %v2636 = vunpack.c.h.b16 %v2444
          %v2637 = vunpack.c.l.b16 %v2445
          %v2638 = vunpack.c.h.b16 %v2445
          %v2639 = vunpack.c.l.b16 %v2446
          %v2640 = vunpack.c.h.b16 %v2446
          %v2641 = vunpack.c.l.b16 %v2447
          %v2642 = vunpack.c.h.b16 %v2447
          %v2643 = vunpack.c.l.b16 %v2448
          %v2644 = vunpack.c.h.b16 %v2448
          %v2645 = vunpack.c.l.b16 %v2449
          %v2646 = vunpack.c.h.b16 %v2449
          %v2647 = vunpack.c.l.b16 %v2450
          %v2648 = vunpack.c.h.b16 %v2450
          %v2649 = vunpack.c.l.b16 %v2451
          %v2650 = vunpack.c.h.b16 %v2451
          %v2651 = vunpack.c.l.b16 %v2452
          %v2652 = vunpack.c.h.b16 %v2452
          %v2653 = vunpack.c.l.b16 %v2453
          %v2654 = vunpack.c.h.b16 %v2453
          %v2655 = vunpack.c.l.b16 %v2454
          %v2656 = vunpack.c.h.b16 %v2454
          %v2657 = vunpack.c.l.b16 %v2455
          %v2658 = vunpack.c.h.b16 %v2455
          %v2659 = vunpack.c.l.b16 %v2456
          %v2660 = vunpack.c.h.b16 %v2456
          %v2661 = vpack.c.b16 %v2535, %v2533
          %v2662 = vpack.c.b16 %v2536, %v2534
          %v2663 = vpack.c.b16 %v2539, %v2537
          %v2664 = vpack.c.b16 %v2540, %v2538
          %v2665 = vpack.c.b16 %v2543, %v2541
          %v2666 = vpack.c.b16 %v2544, %v2542
          %v2667 = vpack.c.b16 %v2547, %v2545
          %v2668 = vpack.c.b16 %v2548, %v2546
          %v2669 = vpack.c.b16 %v2551, %v2549
          %v2670 = vpack.c.b16 %v2552, %v2550
          %v2671 = vpack.c.b16 %v2555, %v2553
          %v2672 = vpack.c.b16 %v2556, %v2554
          %v2673 = vpack.c.b16 %v2559, %v2557
          %v2674 = vpack.c.b16 %v2560, %v2558
          %v2675 = vpack.c.b16 %v2563, %v2561
          %v2676 = vpack.c.b16 %v2564, %v2562
          %v2677 = vpack.c.b16 %v2567, %v2565
          %v2678 = vpack.c.b16 %v2568, %v2566
          %v2679 = vpack.c.b16 %v2571, %v2569
          %v2680 = vpack.c.b16 %v2572, %v2570
          %v2681 = vpack.c.b16 %v2575, %v2573
          %v2682 = vpack.c.b16 %v2576, %v2574
          %v2683 = vpack.c.b16 %v2579, %v2577
          %v2684 = vpack.c.b16 %v2580, %v2578
          %v2685 = vpack.c.b16 %v2583, %v2581
          %v2686 = vpack.c.b16 %v2584, %v2582
          %v2687 = vpack.c.b16 %v2587, %v2585
          %v2688 = vpack.c.b16 %v2588, %v2586
          %v2689 = vpack.c.b16 %v2591, %v2589
          %v2690 = vpack.c.b16 %v2592, %v2590
          %v2691 = vpack.c.b16 %v2595, %v2593
          %v2692 = vpack.c.b16 %v2596, %v2594
          %v2693 = vpack.c.b16 %v2599, %v2597
          %v2694 = vpack.c.b16 %v2600, %v2598
          %v2695 = vpack.c.b16 %v2603, %v2601
          %v2696 = vpack.c.b16 %v2604, %v2602
          %v2697 = vpack.c.b16 %v2607, %v2605
          %v2698 = vpack.c.b16 %v2608, %v2606
          %v2699 = vpack.c.b16 %v2611, %v2609
          %v2700 = vpack.c.b16 %v2612, %v2610
          %v2701 = vpack.c.b16 %v2615, %v2613
          %v2702 = vpack.c.b16 %v2616, %v2614
          %v2703 = vpack.c.b16 %v2619, %v2617
          %v2704 = vpack.c.b16 %v2620, %v2618
          %v2705 = vpack.c.b16 %v2623, %v2621
          %v2706 = vpack.c.b16 %v2624, %v2622
          %v2707 = vpack.c.b16 %v2627, %v2625
          %v2708 = vpack.c.b16 %v2628, %v2626
          %v2709 = vpack.c.b16 %v2631, %v2629
          %v2710 = vpack.c.b16 %v2632, %v2630
          %v2711 = vpack.c.b16 %v2635, %v2633
          %v2712 = vpack.c.b16 %v2636, %v2634
          %v2713 = vpack.c.b16 %v2639, %v2637
          %v2714 = vpack.c.b16 %v2640, %v2638
          %v2715 = vpack.c.b16 %v2643, %v2641
          %v2716 = vpack.c.b16 %v2644, %v2642
          %v2717 = vpack.c.b16 %v2647, %v2645
          %v2718 = vpack.c.b16 %v2648, %v2646
          %v2719 = vpack.c.b16 %v2651, %v2649
          %v2720 = vpack.c.b16 %v2652, %v2650
          %v2721 = vpack.c.b16 %v2655, %v2653
          %v2722 = vpack.c.b16 %v2656, %v2654
          %v2723 = vpack.c.b16 %v2659, %v2657
          %v2724 = vpack.c.b16 %v2660, %v2658
          %2789 = vmatprep.subr.bf16.mxu0 %v2662
          %2790 = vmatpush1.bf16.msra.mxu0 %v2661
          %2791 = vmatprep.subr.bf16.mxu0 %v2664
          %2792 = vmatpush1.bf16.msra.mxu0 %v2663
          %2793 = vmatprep.subr.bf16.mxu0 %v2666
          %2794 = vmatpush1.bf16.msra.mxu0 %v2665
          %2795 = vmatprep.subr.bf16.mxu0 %v2668
          %2796 = vmatpush1.bf16.msra.mxu0 %v2667
          %2797 = vmatprep.subr.bf16.mxu0 %v2670
          %2798 = vmatpush1.bf16.msra.mxu0 %v2669
          %2799 = vmatprep.subr.bf16.mxu0 %v2672
          %2800 = vmatpush1.bf16.msra.mxu0 %v2671
          %2801 = vmatprep.subr.bf16.mxu0 %v2674
          %2802 = vmatpush1.bf16.msra.mxu0 %v2673
          %2803 = vmatprep.subr.bf16.mxu0 %v2676
          %2804 = vmatpush1.bf16.msra.mxu0 %v2675
          %2805 = vmatprep.subr.bf16.mxu0 %v2678
          %2806 = vmatpush1.bf16.msra.mxu0 %v2677
          %2807 = vmatprep.subr.bf16.mxu0 %v2680
          %2808 = vmatpush1.bf16.msra.mxu0 %v2679
          %2809 = vmatprep.subr.bf16.mxu0 %v2682
          %2810 = vmatpush1.bf16.msra.mxu0 %v2681
          %2811 = vmatprep.subr.bf16.mxu0 %v2684
          %2812 = vmatpush1.bf16.msra.mxu0 %v2683
          %2813 = vmatprep.subr.bf16.mxu0 %v2686
          %2814 = vmatpush1.bf16.msra.mxu0 %v2685
          %2815 = vmatprep.subr.bf16.mxu0 %v2688
          %2816 = vmatpush1.bf16.msra.mxu0 %v2687
          %2817 = vmatprep.subr.bf16.mxu0 %v2690
          %2818 = vmatpush1.bf16.msra.mxu0 %v2689
          %2819 = vmatprep.subr.bf16.mxu0 %v2692
          %2820 = vmatpush1.bf16.msra.mxu0 %v2691
          %2821 = vmatprep.mubr.bf16.mxu0 %v2390
          %2822 = vmatmul.mubr.bf16.gmra.mrb[0].mxu0 %v2389
          %v2823 = vpop.f32.mrb[0].mxu0
          %v2824 = vadd.f32 %v2462, %v2823
          %v2825 = vpop.f32.mrb[0].mxu0
          %v2826 = vadd.f32 %v2466, %v2825
          %v2827 = vpop.f32.mrb[0].mxu0
          %v2828 = vpop.f32.mrb[0].mxu0
          %2829 = vdwg.mxu0
          %2830 = vmatprep.subr.bf16.mxu0 %v2694
          %2831 = vmatpush1.bf16.msra.mxu0 %v2693
          %2832 = vmatprep.subr.bf16.mxu0 %v2696
          %2833 = vmatpush1.bf16.msra.mxu0 %v2695
          %2834 = vmatprep.subr.bf16.mxu0 %v2698
          %2835 = vmatpush1.bf16.msra.mxu0 %v2697
          %2836 = vmatprep.subr.bf16.mxu0 %v2700
          %2837 = vmatpush1.bf16.msra.mxu0 %v2699
          %2838 = vmatprep.subr.bf16.mxu0 %v2702
          %2839 = vmatpush1.bf16.msra.mxu0 %v2701
          %2840 = vmatprep.subr.bf16.mxu0 %v2704
          %2841 = vmatpush1.bf16.msra.mxu0 %v2703
          %2842 = vmatprep.subr.bf16.mxu0 %v2706
          %2843 = vmatpush1.bf16.msra.mxu0 %v2705
          %2844 = vmatprep.subr.bf16.mxu0 %v2708
          %2845 = vmatpush1.bf16.msra.mxu0 %v2707
          %2846 = vmatprep.subr.bf16.mxu0 %v2710
          %2847 = vmatpush1.bf16.msra.mxu0 %v2709
          %2848 = vmatprep.subr.bf16.mxu0 %v2712
          %2849 = vmatpush1.bf16.msra.mxu0 %v2711
          %2850 = vmatprep.subr.bf16.mxu0 %v2714
          %2851 = vmatpush1.bf16.msra.mxu0 %v2713
          %2852 = vmatprep.subr.bf16.mxu0 %v2716
          %2853 = vmatpush1.bf16.msra.mxu0 %v2715
          %2854 = vmatprep.subr.bf16.mxu0 %v2718
          %2855 = vmatpush1.bf16.msra.mxu0 %v2717
          %2856 = vmatprep.subr.bf16.mxu0 %v2720
          %2857 = vmatpush1.bf16.msra.mxu0 %v2719
          %2858 = vmatprep.subr.bf16.mxu0 %v2722
          %2859 = vmatpush1.bf16.msra.mxu0 %v2721
          %2860 = vmatprep.subr.bf16.mxu0 %v2724
          %2861 = vmatpush1.bf16.msra.mxu0 %v2723
          %2862 = vmatprep.mubr.bf16.mxu0 %v2392
          %2863 = vmatmul.mubr.bf16.gmra.mrb[0].mxu0 %v2391
          %v2864 = vpop.f32.mrb[0].mxu0
          %v2865 = vadd.f32 %v2824, %v2864
          %v2866 = vpop.f32.mrb[0].mxu0
          %v2867 = vadd.f32 %v2826, %v2866
          %v2868 = vpop.f32.mrb[0].mxu0
          %v2869 = vpop.f32.mrb[0].mxu0
          %2870 = vdwg.mxu0
          %vm2871 = vcmp.gt.f32.partialorder %v2865, 0.0
          %vm2872 = vcmp.gt.f32.partialorder %v2867, 0.0
          %v2873 = vmul.f32 %v2865, 0.2
          %v2874 = vmul.f32 %v2867, 0.2
          %v2875 = vsel %vm2871, %v2865, %v2873
          %v2876 = vsel %vm2872, %v2867, %v2874
          %v2877 = vpack.c.bf16 %v2875, %v2875
          %v2878 = vpack.c.bf16 %v2876, %v2876
          %v2879 = vld [vmem:[#allocation10] sm:$0xf]
          %v2880 = vld [vmem:[#allocation10 + $0x4] sm:$0xf]
          %v2881 = vld [vmem:[#allocation10 + $0x8] sm:$0xf]
          %v2882 = vld [vmem:[#allocation10 + $0xc] sm:$0xf]
          %v2883 = vld [vmem:[#allocation10 + $0x10] sm:$0xf]
          %v2884 = vld [vmem:[#allocation10 + $0x14] sm:$0xf]
          %v2885 = vld [vmem:[#allocation10 + $0x18] sm:$0xf]
          %v2886 = vld [vmem:[#allocation10 + $0x1c] sm:$0xf]
          %v2887 = vld [vmem:[#allocation10 + $0x20] sm:$0xf]
          %v2888 = vld [vmem:[#allocation10 + $0x24] sm:$0xf]
          %v2889 = vld [vmem:[#allocation10 + $0x28] sm:$0xf]
          %v2890 = vld [vmem:[#allocation10 + $0x2c] sm:$0xf]
          %v2891 = vld [vmem:[#allocation10 + $0x30] sm:$0xf]
          %v2892 = vld [vmem:[#allocation10 + $0x34] sm:$0xf]
          %v2893 = vld [vmem:[#allocation10 + $0x38] sm:$0xf]
          %v2894 = vld [vmem:[#allocation10 + $0x3c] sm:$0xf]
          %v2895 = vld [vmem:[#allocation10 + $0x40] sm:$0xf]
          %v2896 = vld [vmem:[#allocation10 + $0x44] sm:$0xf]
          %v2897 = vld [vmem:[#allocation10 + $0x48] sm:$0xf]
          %v2898 = vld [vmem:[#allocation10 + $0x4c] sm:$0xf]
          %v2899 = vld [vmem:[#allocation10 + $0x50] sm:$0xf]
          %v2900 = vld [vmem:[#allocation10 + $0x54] sm:$0xf]
          %v2901 = vld [vmem:[#allocation10 + $0x58] sm:$0xf]
          %v2902 = vld [vmem:[#allocation10 + $0x5c] sm:$0xf]
          %v2903 = vld [vmem:[#allocation10 + $0x60] sm:$0xf]
          %v2904 = vld [vmem:[#allocation10 + $0x64] sm:$0xf]
          %v2905 = vld [vmem:[#allocation10 + $0x68] sm:$0xf]
          %v2906 = vld [vmem:[#allocation10 + $0x6c] sm:$0xf]
          %v2907 = vld [vmem:[#allocation10 + $0x70] sm:$0xf]
          %v2908 = vld [vmem:[#allocation10 + $0x74] sm:$0xf]
          %v2909 = vld [vmem:[#allocation10 + $0x78] sm:$0xf]
          %v2910 = vld [vmem:[#allocation10 + $0x7c] sm:$0xf]
          %v2911 = vld [vmem:[#allocation11] sm:$0x1]
          %v2913 = vlaneseq
          %v2914 = vshrl.u32 %v2913, 7
          %v2915 = vsub.s32 0, %v2914
          %v2916 = vrot.slane %v2911, %v2915
          %v2950 = vunpack.c.l.b16 %v2879
          %v2951 = vunpack.c.l.b16 %v2880
          %v2952 = vunpack.c.l.b16 %v2881
          %v2953 = vunpack.c.l.b16 %v2882
          %v2954 = vunpack.c.l.b16 %v2883
          %v2955 = vunpack.c.l.b16 %v2884
          %v2956 = vunpack.c.l.b16 %v2885
          %v2957 = vunpack.c.l.b16 %v2886
          %v2958 = vunpack.c.l.b16 %v2887
          %v2959 = vunpack.c.l.b16 %v2888
          %v2960 = vunpack.c.l.b16 %v2889
          %v2961 = vunpack.c.l.b16 %v2890
          %v2962 = vunpack.c.l.b16 %v2891
          %v2963 = vunpack.c.l.b16 %v2892
          %v2964 = vunpack.c.l.b16 %v2893
          %v2965 = vunpack.c.l.b16 %v2894
          %v2966 = vunpack.c.l.b16 %v2895
          %v2967 = vunpack.c.l.b16 %v2896
          %v2968 = vunpack.c.l.b16 %v2897
          %v2969 = vunpack.c.l.b16 %v2898
          %v2970 = vunpack.c.l.b16 %v2899
          %v2971 = vunpack.c.l.b16 %v2900
          %v2972 = vunpack.c.l.b16 %v2901
          %v2973 = vunpack.c.l.b16 %v2902
          %v2974 = vunpack.c.l.b16 %v2903
          %v2975 = vunpack.c.l.b16 %v2904
          %v2976 = vunpack.c.l.b16 %v2905
          %v2977 = vunpack.c.l.b16 %v2906
          %v2978 = vunpack.c.l.b16 %v2907
          %v2979 = vunpack.c.l.b16 %v2908
          %v2980 = vunpack.c.l.b16 %v2909
          %v2981 = vunpack.c.l.b16 %v2910
          %v2982 = vpack.c.b16 %v2951, %v2950
          %v2983 = vpack.c.b16 %v2953, %v2952
          %v2984 = vpack.c.b16 %v2955, %v2954
          %v2985 = vpack.c.b16 %v2957, %v2956
          %v2986 = vpack.c.b16 %v2959, %v2958
          %v2987 = vpack.c.b16 %v2961, %v2960
          %v2988 = vpack.c.b16 %v2963, %v2962
          %v2989 = vpack.c.b16 %v2965, %v2964
          %v2990 = vpack.c.b16 %v2967, %v2966
          %v2991 = vpack.c.b16 %v2969, %v2968
          %v2992 = vpack.c.b16 %v2971, %v2970
          %v2993 = vpack.c.b16 %v2973, %v2972
          %v2994 = vpack.c.b16 %v2975, %v2974
          %v2995 = vpack.c.b16 %v2977, %v2976
          %v2996 = vpack.c.b16 %v2979, %v2978
          %v2997 = vpack.c.b16 %v2981, %v2980
          %3014 = vmatprep.subr.bf16.mxu0 0
          %3015 = vmatpush1.bf16.msra.mxu0 %v2982
          %3016 = vmatprep.subr.bf16.mxu0 0
          %3017 = vmatpush1.bf16.msra.mxu0 %v2983
          %3018 = vmatprep.subr.bf16.mxu0 0
          %3019 = vmatpush1.bf16.msra.mxu0 %v2984
          %3020 = vmatprep.subr.bf16.mxu0 0
          %3021 = vmatpush1.bf16.msra.mxu0 %v2985
          %3022 = vmatprep.subr.bf16.mxu0 0
          %3023 = vmatpush1.bf16.msra.mxu0 %v2986
          %3024 = vmatprep.subr.bf16.mxu0 0
          %3025 = vmatpush1.bf16.msra.mxu0 %v2987
          %3026 = vmatprep.subr.bf16.mxu0 0
          %3027 = vmatpush1.bf16.msra.mxu0 %v2988
          %3028 = vmatprep.subr.bf16.mxu0 0
          %3029 = vmatpush1.bf16.msra.mxu0 %v2989
          %3030 = vmatprep.subr.bf16.mxu0 0
          %3031 = vmatpush1.bf16.msra.mxu0 %v2990
          %3032 = vmatprep.subr.bf16.mxu0 0
          %3033 = vmatpush1.bf16.msra.mxu0 %v2991
          %3034 = vmatprep.subr.bf16.mxu0 0
          %3035 = vmatpush1.bf16.msra.mxu0 %v2992
          %3036 = vmatprep.subr.bf16.mxu0 0
          %3037 = vmatpush1.bf16.msra.mxu0 %v2993
          %3038 = vmatprep.subr.bf16.mxu0 0
          %3039 = vmatpush1.bf16.msra.mxu0 %v2994
          %3040 = vmatprep.subr.bf16.mxu0 0
          %3041 = vmatpush1.bf16.msra.mxu0 %v2995
          %3042 = vmatprep.subr.bf16.mxu0 0
          %3043 = vmatpush1.bf16.msra.mxu0 %v2996
          %3044 = vmatprep.subr.bf16.mxu0 0
          %3045 = vmatpush1.bf16.msra.mxu0 %v2997
          %3046 = vmatprep.mubr.bf16.mxu0 %v2878
          %3047 = vmatmul.mubr.bf16.gmra.mrb[0].mxu0 %v2877
          %v3048 = vpop.f32.mrb[0].mxu0
          %v3049 = vadd.f32 %v2916, %v3048
          %v3050 = vpop.f32.mrb[0].mxu0
          %v3051 = vpop.f32.mrb[0].mxu0
          %v3052 = vpop.f32.mrb[0].mxu0
          %3053 = vdwg.mxu0
          %v3054 = vand.u32 2147483647, %v3049
          %v3055 = vsub.f32 0.0, %v3054
          %v3056 = vmul.f32 %v3055, 1.442695
          %v3057 = vpow.pop %v3056
          %v3058 = vadd.f32 %v3057, 1.0
          %v3059 = vrcp.pop %v3058
          %vm3060 = vcmp.ge.f32.partialorder %v3049, 0.0
          %v3061 = vmul.f32 %v3057, %v3059
          %v3062 = vsel %vm3060, %v3059, %v3061
          %3063 = vst [vmem:[%s413] sm:$0xff] %v3062
        $region84: #{discriminator_forward.1} parent=47 // pred_fallthru
          _
        %p3064 = scmp.lt.s32.totalorder %s28, 0
        %s3065 = scalar_select %p3064, %s28, 0
        %s3066 = smul.addr %s3065, 8
        %s3067 = scalar_lea.vmem %s7, %s3066
        // Predicated region
        $region85: #{discriminator_forward.1} parent=47 // pred_check
          %p3068 = pneg %p213
        $region86: #{discriminator_forward.1} parent=47 // pred_check_branch
          %3070 = sbr.rel (%p3068) target = $region88
        $region87: #{discriminator_forward.1} parent=47 // pred_region
          _
        $region88: #{discriminator_forward.1} parent=47 // pred_fallthru
          _
        // Predicated region
        $region89: #{discriminator_forward.1} parent=47 // pred_check
          %p3071 = pneg %p213
        $region90: #{discriminator_forward.1} parent=47 // pred_check_branch
          %3073 = sbr.rel (%p3071) target = $region92
        $region91: #{discriminator_forward.1} parent=47 // pred_region
          %p3074 = scmp.lt.s32.totalorder %s28, 0
          %s3075 = scalar_select %p3074, %s28, 0
          %s3076 = smul.addr %s3075, 8
          %s3077 = scalar_lea.vmem %s7, %s3076
        $region92: #{discriminator_forward.1} parent=47 // pred_fallthru
          _
      $region48: #{discriminator_forward.1} parent=5 // pred_fallthru
        _
      %p3078 = scmp.le.s32.totalorder 2, %s19
      // Predicated region
      $region93: #{discriminator_forward.1} parent=5 // pred_check
        %p3079 = pneg %p3078
      $region94: #{discriminator_forward.1} parent=5 // pred_check_branch
        %3081 = sbr.rel (%p3079) target = $region96
      $region95: #{discriminator_forward.1} parent=5 // pred_region
        %s3082 = ssub.s32 %s19, 2
      $region96: #{discriminator_forward.1} parent=5 // pred_fallthru
        _
    $region6: #{discriminator_forward.1} parent=1 // loop_footer
      %s23 = sadd.s32 1, %s19
    $region7: #{discriminator_forward.1} parent=1 // loop_footer_branch
      %18 = sbr.rel target = $region3
    $region8: #{discriminator_forward.1} parent=1 // loop_exit
      _
    %3083 = vsyncpa [#allocation4], 1
    %s3084 = scalar_lea.sflag [#allocation4], 1
    %3085 = vsyncpa %s3084, 1
    %3086 = vsyncpa [#allocation6], 1
    %3087 = vsyncpa [#allocation9], 1
    %3088 = vsyncpa [#allocation12], 1

</llo_original>
